<compile_context>
chip_gen: v6e
topology: v6e:2x2x1
jax: 0.10.0
libtpu: 0.0.40
codegen_flags: <defaults>
</compile_context>

<pallas_src>
import functools

import jax
import jax.numpy as jnp
from jax.experimental import pallas as pl
from jax.experimental.pallas import tpu as pltpu


# ----------------------------------------------------------------------------
# Fused BasicBlock kernel (one batch element per grid step)
# ----------------------------------------------------------------------------
def _basic_block_kernel(x_ref, w1_ref, b1_ref, w2_ref, b2_ref, *rest,
                        stride, has_down, Ho, Wo, cin, cout, compute_dtype):
    if has_down:
        wd_ref, bd_ref, o_ref, xpad_ref, hpad_ref = rest
    else:
        o_ref, xpad_ref, hpad_ref = rest

    x = x_ref[0]  # stride==2: (Ho, Wo, 4*cin) space-to-depth; else (H, W, cin)

    # ---------------- conv1 (3x3, stride s) + BN1 (folded) + ReLU -----------
    # Padding realised in-kernel: zero the scratch, store the tile interior.
    xpad_ref[...] = jnp.zeros(xpad_ref.shape, xpad_ref.dtype)
    taps = []
    if stride == 2:
        # x is space-to-depth: channel block (pr*2+pc)*cin holds original
        # pixel (2*by+pr, 2*bx+pc).  Pad of 1 is only needed at top/left.
        xpad_ref[1:, 1:, :] = x
        xp = xpad_ref[...]                       # (Ho+1, Wo+1, 4*cin)
        # tap dy reads original row 2y+dy-1 -> (parity, padded-row offset)
        off = ((1, 0), (0, 1), (1, 1))           # dy/dx = 0,1,2
        for dy in range(3):
            pr, ry = off[dy]
            for dx in range(3):
                pc, rx = off[dx]
                c0 = (pr * 2 + pc) * cin
                taps.append(xp[ry:ry + Ho, rx:rx + Wo, c0:c0 + cin]
                            .reshape(Ho * Wo, cin))
    else:
        xpad_ref[1:Ho + 1, 1:Wo + 1, :] = x
        xp = xpad_ref[...]                       # (Ho+2, Wo+2, cin)
        for dy in range(3):
            for dx in range(3):
                taps.append(xp[dy:dy + Ho, dx:dx + Wo, :]
                            .reshape(Ho * Wo, cin))
    patches1 = jnp.concatenate(taps, axis=1)     # (Ho*Wo, 9*cin)

    h = jnp.dot(patches1.astype(compute_dtype), w1_ref[...],
                preferred_element_type=jnp.float32)            # (Ho*Wo, cout)
    h = jnp.maximum(h + b1_ref[...], 0.0)

    # ---------------- conv2 (3x3, stride 1) + BN2 (folded) ------------------
    hpad_ref[...] = jnp.zeros(hpad_ref.shape, hpad_ref.dtype)
    hpad_ref[1:Ho + 1, 1:Wo + 1, :] = h.reshape(Ho, Wo, cout)
    hp = hpad_ref[...]                           # (Ho+2, Wo+2, cout)
    taps2 = []
    for dy in range(3):
        for dx in range(3):
            taps2.append(hp[dy:dy + Ho, dx:dx + Wo, :].reshape(Ho * Wo, cout))
    patches2 = jnp.concatenate(taps2, axis=1)    # (Ho*Wo, 9*cout)
    out = jnp.dot(patches2.astype(compute_dtype), w2_ref[...],
                  preferred_element_type=jnp.float32) + b2_ref[...]

    # ---------------- residual path -----------------------------------------
    if has_down:
        if stride == 2:
            # 1x1 stride-2 conv reads original pixels (2y, 2x) = s2d plane 0.
            xsub = x[:, :, 0:cin].reshape(Ho * Wo, cin)
        else:
            xsub = x.reshape(Ho * Wo, cin)
        identity = jnp.dot(xsub.astype(compute_dtype), wd_ref[...],
                           preferred_element_type=jnp.float32) + bd_ref[...]
    else:
        identity = x.reshape(Ho * Wo, cout)

    out = jnp.maximum(out + identity, 0.0)

    # ---------------- lane-dense store: (cout, Ho*Wo) == NCHW-flat ----------
    o_ref[0] = out.T.astype(o_ref.dtype)


# ----------------------------------------------------------------------------
# Wrapper
# ----------------------------------------------------------------------------
def fold_bn(gamma, beta, mean, var, eps=1e-5):
    scale = gamma * jax.lax.rsqrt(var + eps)
    bias = beta - mean * scale
    return scale, bias


def basic_block_forward(x_nchw, p, in_c, out_c, stride,
                        compute_dtype=jnp.float32):
    N, C, H, W = x_nchw.shape
    assert C == in_c
    assert stride in (1, 2), "only stride 1/2 supported (as used by ResNet)"
    if stride == 2:
        assert H % 2 == 0 and W % 2 == 0
    Ho = (H - 1) // stride + 1
    Wo = (W - 1) // stride + 1
    has_down = (stride != 1) or (in_c != out_c)

    # Fold BN scale into the conv weights (inference); keep only the bias.
    s1, b1 = fold_bn(p["bn1_g"], p["bn1_b"], p["bn1_m"], p["bn1_v"])
    s2, b2 = fold_bn(p["bn2_g"], p["bn2_b"], p["bn2_m"], p["bn2_v"])
    w1 = (p["w1"].reshape(9 * in_c, out_c) * s1[None, :]).astype(compute_dtype)
    w2 = (p["w2"].reshape(9 * out_c, out_c) * s2[None, :]).astype(compute_dtype)
    b1 = b1[None, :].astype(jnp.float32)
    b2 = b2[None, :].astype(jnp.float32)

    x_nhwc = jnp.transpose(x_nchw, (0, 2, 3, 1))
    if stride == 2:
        # Space-to-depth so the strided conv is unit-stride inside the kernel.
        x_in = (x_nhwc.reshape(N, Ho, 2, Wo, 2, in_c)
                .transpose(0, 1, 3, 2, 4, 5)
                .reshape(N, Ho, Wo, 4 * in_c))
        cin_blk = 4 * in_c
        pad_shape = (Ho + 1, Wo + 1, cin_blk)
    else:
        x_in = x_nhwc
        cin_blk = in_c
        pad_shape = (H + 2, W + 2, in_c)

    args = [x_in, w1, b1, w2, b2]
    in_specs = [
        pl.BlockSpec((1, x_in.shape[1], x_in.shape[2], cin_blk),
                     lambda n: (n, 0, 0, 0)),
        pl.BlockSpec(w1.shape, lambda n: (0, 0)),
        pl.BlockSpec(b1.shape, lambda n: (0, 0)),
        pl.BlockSpec(w2.shape, lambda n: (0, 0)),
        pl.BlockSpec(b2.shape, lambda n: (0, 0)),
    ]
    if has_down:
        sd, bd = fold_bn(p["bnd_g"], p["bnd_b"], p["bnd_m"], p["bnd_v"])
        wd = (p["wd"].reshape(in_c, out_c) * sd[None, :]).astype(compute_dtype)
        bd = bd[None, :].astype(jnp.float32)
        args += [wd, bd]
        in_specs += [pl.BlockSpec(wd.shape, lambda n: (0, 0)),
                     pl.BlockSpec(bd.shape, lambda n: (0, 0))]

    kernel = functools.partial(
        _basic_block_kernel, stride=stride, has_down=has_down,
        Ho=Ho, Wo=Wo, cin=in_c, cout=out_c, compute_dtype=compute_dtype)

    out = pl.pallas_call(
        kernel,
        out_shape=jax.ShapeDtypeStruct((N, out_c, Ho * Wo), jnp.float32),
        grid=(N,),
        in_specs=in_specs,
        out_specs=pl.BlockSpec((1, out_c, Ho * Wo), lambda n: (n, 0, 0)),
        scratch_shapes=[pltpu.VMEM(pad_shape, jnp.float32),
                        pltpu.VMEM((Ho + 2, Wo + 2, out_c), jnp.float32)],
        compiler_params=pltpu.CompilerParams(
            dimension_semantics=("parallel",)),
    )(*args)

    return out.reshape(N, out_c, Ho, Wo)      # free reshape: already NCHW-flat


# ----------------------------------------------------------------------------
# Pure-JAX reference (for correctness check)
# ----------------------------------------------------------------------------
def reference_forward(x_nchw, p, in_channels, out_channels, stride, eps=1e-5):
    x = jnp.transpose(x_nchw, (0, 2, 3, 1))
    dn = ("NHWC", "HWIO", "NHWC")

    def conv(x, w, s, pad):
        return jax.lax.conv_general_dilated(
            x, w, (s, s), [(pad, pad), (pad, pad)], dimension_numbers=dn)

    def bn(x, g, b, m, v):
        return (x - m) * jax.lax.rsqrt(v + eps) * g + b

    if stride != 1 or in_channels != out_channels:
        identity = bn(conv(x, p["wd"], stride, 0),
                      p["bnd_g"], p["bnd_b"], p["bnd_m"], p["bnd_v"])
    else:
        identity = x

    out = jax.nn.relu(bn(conv(x, p["w1"], stride, 1),
                         p["bn1_g"], p["bn1_b"], p["bn1_m"], p["bn1_v"]))
    out = bn(conv(out, p["w2"], 1, 1),
             p["bn2_g"], p["bn2_b"], p["bn2_m"], p["bn2_v"])
    out = jax.nn.relu(out + identity)
    return jnp.transpose(out, (0, 3, 1, 2))


# ----------------------------------------------------------------------------
# Main
# ----------------------------------------------------------------------------
def make_params(key, in_c, out_c):
    ks = jax.random.split(key, 15)
    p = {
        "w1": 0.1 * jax.random.normal(ks[0], (3, 3, in_c, out_c), jnp.float32),
        "w2": 0.1 * jax.random.normal(ks[1], (3, 3, out_c, out_c), jnp.float32),
        "wd": 0.1 * jax.random.normal(ks[2], (1, 1, in_c, out_c), jnp.float32),
    }
    i = 3
    for name in ("bn1", "bn2", "bnd"):
        p[name + "_g"] = jax.random.uniform(ks[i], (out_c,), jnp.float32, 0.5, 1.5)
        p[name + "_b"] = 0.1 * jax.random.normal(ks[i + 1], (out_c,), jnp.float32)
        p[name + "_m"] = 0.1 * jax.random.normal(ks[i + 2], (out_c,), jnp.float32)
        p[name + "_v"] = jax.random.uniform(ks[i + 3], (out_c,), jnp.float32, 0.5, 1.5)
        i += 4
    return p


if __name__ == "__main__":
    key = jax.random.PRNGKey(0)
    k_x1, k_p1, k_x2, k_p2 = jax.random.split(key, 4)

    # Config A: stride-2 downsample block, 4 -> 8 channels, 16x16 input.
    in_c, out_c, stride = 4, 8, 2
    N, H, W = 2, 16, 16
    x = jax.random.normal(k_x1, (N, in_c, H, W), jnp.float32)
    params = make_params(k_p1, in_c, out_c)

    out = jax.block_until_ready(basic_block_forward(x, params, in_c, out_c, stride))
    ref = jax.block_until_ready(reference_forward(x, params, in_c, out_c, stride))
    assert out.shape == (N, out_c, H // stride, W // stride), out.shape
    assert jnp.allclose(out, ref, rtol=1e-4, atol=1e-4), \
        float(jnp.max(jnp.abs(out - ref)))

    # Config B: stride-1 identity block (8 -> 8), exercises the no-downsample path.
    x2 = jax.random.normal(k_x2, (N, out_c, H, W), jnp.float32)
    params2 = make_params(k_p2, out_c, out_c)
    out2 = jax.block_until_ready(basic_block_forward(x2, params2, out_c, out_c, 1))
    ref2 = jax.block_until_ready(reference_forward(x2, params2, out_c, out_c, 1))
    assert out2.shape == (N, out_c, H, W), out2.shape
    assert jnp.allclose(out2, ref2, rtol=1e-4, atol=1e-4), \
        float(jnp.max(jnp.abs(out2 - ref2)))

    # Config A with bf16 MXU operands (v6e/v7x fast path), f32 accumulate.
    out_bf = jax.block_until_ready(
        basic_block_forward(x, params, in_c, out_c, stride,
                            compute_dtype=jnp.bfloat16))
    assert jnp.allclose(out_bf, ref, rtol=2e-2, atol=2e-2), \
        float(jnp.max(jnp.abs(out_bf - ref)))

    print("KERNEL_OK")
</pallas_src>

<mosaic_0001>
module attributes {stable_mosaic.version = 11 : i64} {
  func.func @_basic_block_kernel(%arg0: i32, %arg1: memref<1x8x8x16xf32, #tpu.memory_space<vmem>>, %arg2: memref<36x8xf32, #tpu.memory_space<vmem>>, %arg3: memref<1x8xf32, #tpu.memory_space<vmem>>, %arg4: memref<72x8xf32, #tpu.memory_space<vmem>>, %arg5: memref<1x8xf32, #tpu.memory_space<vmem>>, %arg6: memref<4x8xf32, #tpu.memory_space<vmem>>, %arg7: memref<1x8xf32, #tpu.memory_space<vmem>>, %arg8: memref<1x8x64xf32, #tpu.memory_space<vmem>>, %arg9: memref<9x9x16xf32, #tpu.memory_space<vmem>>, %arg10: memref<10x10x8xf32, #tpu.memory_space<vmem>>) attributes {dimension_semantics = [#tpu.dimension_semantics<parallel>], iteration_bounds = array<i64: 2>, scalar_prefetch = 0 : i64, scratch_operands = 2 : i64, tpu.core_type = #tpu.core_type<tc>, window_params = [{transform_indices = @transform_0, window_bounds = array<i64: 1, 8, 8, 16>}, {pipeline_mode = #tpu.pipeline_mode<synchronous>, transform_indices = @transform_1, window_bounds = array<i64: 36, 8>}, {pipeline_mode = #tpu.pipeline_mode<synchronous>, transform_indices = @transform_2, window_bounds = array<i64: 1, 8>}, {pipeline_mode = #tpu.pipeline_mode<synchronous>, transform_indices = @transform_3, window_bounds = array<i64: 72, 8>}, {pipeline_mode = #tpu.pipeline_mode<synchronous>, transform_indices = @transform_4, window_bounds = array<i64: 1, 8>}, {pipeline_mode = #tpu.pipeline_mode<synchronous>, transform_indices = @transform_5, window_bounds = array<i64: 4, 8>}, {pipeline_mode = #tpu.pipeline_mode<synchronous>, transform_indices = @transform_6, window_bounds = array<i64: 1, 8>}, {transform_indices = @transform_7, window_bounds = array<i64: 1, 8, 64>}]} {
    %c0 = arith.constant 0 : index
    %c0_0 = arith.constant 0 : index
    %c0_1 = arith.constant 0 : index
    %c0_2 = arith.constant 0 : index
    %0 = vector.load %arg1[%c0, %c0_0, %c0_1, %c0_2] : memref<1x8x8x16xf32, #tpu.memory_space<vmem>>, vector<1x8x8x16xf32>
    %1 = vector.shape_cast %0 : vector<1x8x8x16xf32> to vector<8x8x16xf32>
    %cst = arith.constant 0.000000e+00 : f32
    %2 = vector.broadcast %cst : f32 to vector<9x9x16xf32>
    %c0_3 = arith.constant 0 : index
    %c0_4 = arith.constant 0 : index
    %c0_5 = arith.constant 0 : index
    %3 = vector.load %arg9[%c0_3, %c0_4, %c0_5] : memref<9x9x16xf32, #tpu.memory_space<vmem>>, vector<9x9x16xf32>
    tpu.vector_store %arg9[%c0_3, %c0_4, %c0_5], %2 {strides = array<i32>} : memref<9x9x16xf32, #tpu.memory_space<vmem>>, vector<9x9x16xf32>,
    %c1 = arith.constant 1 : index
    %c1_6 = arith.constant 1 : index
    %c0_7 = arith.constant 0 : index
    %4 = vector.load %arg9[%c1, %c1_6, %c0_7] : memref<9x9x16xf32, #tpu.memory_space<vmem>>, vector<8x8x16xf32>
    tpu.vector_store %arg9[%c1, %c1_6, %c0_7], %1 {strides = array<i32>} : memref<9x9x16xf32, #tpu.memory_space<vmem>>, vector<8x8x16xf32>,
    %c0_8 = arith.constant 0 : index
    %c0_9 = arith.constant 0 : index
    %c0_10 = arith.constant 0 : index
    %5 = vector.load %arg9[%c0_8, %c0_9, %c0_10] : memref<9x9x16xf32, #tpu.memory_space<vmem>>, vector<9x9x16xf32>
    %6 = vector.extract_strided_slice %5 {offsets = [0, 0, 12], sizes = [8, 8, 4], strides = [1, 1, 1]} : vector<9x9x16xf32> to vector<8x8x4xf32>
    %7 = vector.shape_cast %6 : vector<8x8x4xf32> to vector<64x4xf32>
    %8 = vector.extract_strided_slice %5 {offsets = [0, 1, 8], sizes = [8, 8, 4], strides = [1, 1, 1]} : vector<9x9x16xf32> to vector<8x8x4xf32>
    %9 = vector.shape_cast %8 : vector<8x8x4xf32> to vector<64x4xf32>
    %10 = vector.extract_strided_slice %5 {offsets = [0, 1, 12], sizes = [8, 8, 4], strides = [1, 1, 1]} : vector<9x9x16xf32> to vector<8x8x4xf32>
    %11 = vector.shape_cast %10 : vector<8x8x4xf32> to vector<64x4xf32>
    %12 = vector.extract_strided_slice %5 {offsets = [1, 0, 4], sizes = [8, 8, 4], strides = [1, 1, 1]} : vector<9x9x16xf32> to vector<8x8x4xf32>
    %13 = vector.shape_cast %12 : vector<8x8x4xf32> to vector<64x4xf32>
    %14 = vector.extract_strided_slice %5 {offsets = [1, 1, 0], sizes = [8, 8, 4], strides = [1, 1, 1]} : vector<9x9x16xf32> to vector<8x8x4xf32>
    %15 = vector.shape_cast %14 : vector<8x8x4xf32> to vector<64x4xf32>
    %16 = vector.extract_strided_slice %5 {offsets = [1, 1, 4], sizes = [8, 8, 4], strides = [1, 1, 1]} : vector<9x9x16xf32> to vector<8x8x4xf32>
    %17 = vector.shape_cast %16 : vector<8x8x4xf32> to vector<64x4xf32>
    %18 = vector.extract_strided_slice %5 {offsets = [1, 0, 12], sizes = [8, 8, 4], strides = [1, 1, 1]} : vector<9x9x16xf32> to vector<8x8x4xf32>
    %19 = vector.shape_cast %18 : vector<8x8x4xf32> to vector<64x4xf32>
    %20 = vector.extract_strided_slice %5 {offsets = [1, 1, 8], sizes = [8, 8, 4], strides = [1, 1, 1]} : vector<9x9x16xf32> to vector<8x8x4xf32>
    %21 = vector.shape_cast %20 : vector<8x8x4xf32> to vector<64x4xf32>
    %22 = vector.extract_strided_slice %5 {offsets = [1, 1, 12], sizes = [8, 8, 4], strides = [1, 1, 1]} : vector<9x9x16xf32> to vector<8x8x4xf32>
    %23 = vector.shape_cast %22 : vector<8x8x4xf32> to vector<64x4xf32>
    %24 = tpu.concatenate %7, %9, %11, %13, %15, %17, %19, %21, %23 in 1 : vector<64x4xf32>, vector<64x4xf32>, vector<64x4xf32>, vector<64x4xf32>, vector<64x4xf32>, vector<64x4xf32>, vector<64x4xf32>, vector<64x4xf32>, vector<64x4xf32> -> vector<64x36xf32>
    %c0_11 = arith.constant 0 : index
    %c0_12 = arith.constant 0 : index
    %25 = vector.load %arg2[%c0_11, %c0_12] : memref<36x8xf32, #tpu.memory_space<vmem>>, vector<36x8xf32>
    %cst_13 = arith.constant dense<0.000000e+00> : vector<64x8xf32>
    %26 = tpu.matmul %24, %25, %cst_13 {dimension_numbers = #tpu.dot_dimension_numbers<[1], [0], [0], [1], [0, 0, 1, 1], [], []>} : vector<64x36xf32>, vector<36x8xf32>, vector<64x8xf32> -> vector<64x8xf32>
    %c0_14 = arith.constant 0 : index
    %c0_15 = arith.constant 0 : index
    %27 = vector.load %arg3[%c0_14, %c0_15] : memref<1x8xf32, #tpu.memory_space<vmem>>, vector<1x8xf32>
    %28 = vector.broadcast %27 : vector<1x8xf32> to vector<64x8xf32>
    %29 = arith.addf %26, %28 : vector<64x8xf32>
    %cst_16 = arith.constant 0.000000e+00 : f32
    %30 = vector.broadcast %cst_16 : f32 to vector<64x8xf32>
    %31 = arith.maximumf %29, %30 : vector<64x8xf32>
    %cst_17 = arith.constant 0.000000e+00 : f32
    %32 = vector.broadcast %cst_17 : f32 to vector<10x10x8xf32>
    %c0_18 = arith.constant 0 : index
    %c0_19 = arith.constant 0 : index
    %c0_20 = arith.constant 0 : index
    %33 = vector.load %arg10[%c0_18, %c0_19, %c0_20] : memref<10x10x8xf32, #tpu.memory_space<vmem>>, vector<10x10x8xf32>
    tpu.vector_store %arg10[%c0_18, %c0_19, %c0_20], %32 {strides = array<i32>} : memref<10x10x8xf32, #tpu.memory_space<vmem>>, vector<10x10x8xf32>,
    %34 = vector.shape_cast %31 : vector<64x8xf32> to vector<8x8x8xf32>
    %c1_21 = arith.constant 1 : index
    %c1_22 = arith.constant 1 : index
    %c0_23 = arith.constant 0 : index
    %35 = vector.load %arg10[%c1_21, %c1_22, %c0_23] : memref<10x10x8xf32, #tpu.memory_space<vmem>>, vector<8x8x8xf32>
    tpu.vector_store %arg10[%c1_21, %c1_22, %c0_23], %34 {strides = array<i32>} : memref<10x10x8xf32, #tpu.memory_space<vmem>>, vector<8x8x8xf32>,
    %c0_24 = arith.constant 0 : index
    %c0_25 = arith.constant 0 : index
    %c0_26 = arith.constant 0 : index
    %36 = vector.load %arg10[%c0_24, %c0_25, %c0_26] : memref<10x10x8xf32, #tpu.memory_space<vmem>>, vector<10x10x8xf32>
    %37 = vector.extract_strided_slice %36 {offsets = [0, 0, 0], sizes = [8, 8, 8], strides = [1, 1, 1]} : vector<10x10x8xf32> to vector<8x8x8xf32>
    %38 = vector.shape_cast %37 : vector<8x8x8xf32> to vector<64x8xf32>
    %39 = vector.extract_strided_slice %36 {offsets = [0, 1, 0], sizes = [8, 8, 8], strides = [1, 1, 1]} : vector<10x10x8xf32> to vector<8x8x8xf32>
    %40 = vector.shape_cast %39 : vector<8x8x8xf32> to vector<64x8xf32>
    %41 = vector.extract_strided_slice %36 {offsets = [0, 2, 0], sizes = [8, 8, 8], strides = [1, 1, 1]} : vector<10x10x8xf32> to vector<8x8x8xf32>
    %42 = vector.shape_cast %41 : vector<8x8x8xf32> to vector<64x8xf32>
    %43 = vector.extract_strided_slice %36 {offsets = [1, 0, 0], sizes = [8, 8, 8], strides = [1, 1, 1]} : vector<10x10x8xf32> to vector<8x8x8xf32>
    %44 = vector.shape_cast %43 : vector<8x8x8xf32> to vector<64x8xf32>
    %45 = vector.extract_strided_slice %36 {offsets = [1, 1, 0], sizes = [8, 8, 8], strides = [1, 1, 1]} : vector<10x10x8xf32> to vector<8x8x8xf32>
    %46 = vector.shape_cast %45 : vector<8x8x8xf32> to vector<64x8xf32>
    %47 = vector.extract_strided_slice %36 {offsets = [1, 2, 0], sizes = [8, 8, 8], strides = [1, 1, 1]} : vector<10x10x8xf32> to vector<8x8x8xf32>
    %48 = vector.shape_cast %47 : vector<8x8x8xf32> to vector<64x8xf32>
    %49 = vector.extract_strided_slice %36 {offsets = [2, 0, 0], sizes = [8, 8, 8], strides = [1, 1, 1]} : vector<10x10x8xf32> to vector<8x8x8xf32>
    %50 = vector.shape_cast %49 : vector<8x8x8xf32> to vector<64x8xf32>
    %51 = vector.extract_strided_slice %36 {offsets = [2, 1, 0], sizes = [8, 8, 8], strides = [1, 1, 1]} : vector<10x10x8xf32> to vector<8x8x8xf32>
    %52 = vector.shape_cast %51 : vector<8x8x8xf32> to vector<64x8xf32>
    %53 = vector.extract_strided_slice %36 {offsets = [2, 2, 0], sizes = [8, 8, 8], strides = [1, 1, 1]} : vector<10x10x8xf32> to vector<8x8x8xf32>
    %54 = vector.shape_cast %53 : vector<8x8x8xf32> to vector<64x8xf32>
    %55 = tpu.concatenate %38, %40, %42, %44, %46, %48, %50, %52, %54 in 1 : vector<64x8xf32>, vector<64x8xf32>, vector<64x8xf32>, vector<64x8xf32>, vector<64x8xf32>, vector<64x8xf32>, vector<64x8xf32>, vector<64x8xf32>, vector<64x8xf32> -> vector<64x72xf32>
    %c0_27 = arith.constant 0 : index
    %c0_28 = arith.constant 0 : index
    %56 = vector.load %arg4[%c0_27, %c0_28] : memref<72x8xf32, #tpu.memory_space<vmem>>, vector<72x8xf32>
    %cst_29 = arith.constant dense<0.000000e+00> : vector<64x8xf32>
    %57 = tpu.matmul %55, %56, %cst_29 {dimension_numbers = #tpu.dot_dimension_numbers<[1], [0], [0], [1], [0, 0, 1, 1], [], []>} : vector<64x72xf32>, vector<72x8xf32>, vector<64x8xf32> -> vector<64x8xf32>
    %c0_30 = arith.constant 0 : index
    %c0_31 = arith.constant 0 : index
    %58 = vector.load %arg5[%c0_30, %c0_31] : memref<1x8xf32, #tpu.memory_space<vmem>>, vector<1x8xf32>
    %59 = vector.broadcast %58 : vector<1x8xf32> to vector<64x8xf32>
    %60 = arith.addf %57, %59 : vector<64x8xf32>
    %61 = vector.extract_strided_slice %1 {offsets = [0, 0, 0], sizes = [8, 8, 4], strides = [1, 1, 1]} : vector<8x8x16xf32> to vector<8x8x4xf32>
    %62 = vector.shape_cast %61 : vector<8x8x4xf32> to vector<64x4xf32>
    %c0_32 = arith.constant 0 : index
    %c0_33 = arith.constant 0 : index
    %63 = vector.load %arg6[%c0_32, %c0_33] : memref<4x8xf32, #tpu.memory_space<vmem>>, vector<4x8xf32>
    %cst_34 = arith.constant dense<0.000000e+00> : vector<64x8xf32>
    %64 = tpu.matmul %62, %63, %cst_34 {dimension_numbers = #tpu.dot_dimension_numbers<[1], [0], [0], [1], [0, 0, 1, 1], [], []>} : vector<64x4xf32>, vector<4x8xf32>, vector<64x8xf32> -> vector<64x8xf32>
    %c0_35 = arith.constant 0 : index
    %c0_36 = arith.constant 0 : index
    %65 = vector.load %arg7[%c0_35, %c0_36] : memref<1x8xf32, #tpu.memory_space<vmem>>, vector<1x8xf32>
    %66 = vector.broadcast %65 : vector<1x8xf32> to vector<64x8xf32>
    %67 = arith.addf %64, %66 : vector<64x8xf32>
    %68 = arith.addf %60, %67 : vector<64x8xf32>
    %cst_37 = arith.constant 0.000000e+00 : f32
    %69 = vector.broadcast %cst_37 : f32 to vector<64x8xf32>
    %70 = arith.maximumf %68, %69 : vector<64x8xf32>
    %71 = tpu.transpose %70, [1, 0] : vector<64x8xf32> -> vector<8x64xf32>
    %c0_38 = arith.constant 0 : index
    %c0_39 = arith.constant 0 : index
    %c0_40 = arith.constant 0 : index
    %72 = vector.load %arg8[%c0_38, %c0_39, %c0_40] : memref<1x8x64xf32, #tpu.memory_space<vmem>>, vector<1x8x64xf32>
    %73 = vector.shape_cast %72 : vector<1x8x64xf32> to vector<8x64xf32>
    %74 = vector.shape_cast %71 : vector<8x64xf32> to vector<1x8x64xf32>
    tpu.vector_store %arg8[%c0_38, %c0_39, %c0_40], %74 {strides = array<i32>} : memref<1x8x64xf32, #tpu.memory_space<vmem>>, vector<1x8x64xf32>,
    return
  }
  func.func @transform_0(%arg0: i32) -> (i32, i32, i32, i32) {
    %c0_i32 = arith.constant 0 : i32
    %c0_i32_0 = arith.constant 0 : i32
    %c0_i32_1 = arith.constant 0 : i32
    %c0_i32_2 = arith.constant 0 : i32
    return %arg0, %c0_i32, %c0_i32_0, %c0_i32_1 : i32, i32, i32, i32
  }
  func.func @transform_1(%arg0: i32) -> (i32, i32) {
    %c0_i32 = arith.constant 0 : i32
    %c0_i32_0 = arith.constant 0 : i32
    %c0_i32_1 = arith.constant 0 : i32
    return %c0_i32, %c0_i32_0 : i32, i32
  }
  func.func @transform_2(%arg0: i32) -> (i32, i32) {
    %c0_i32 = arith.constant 0 : i32
    %c0_i32_0 = arith.constant 0 : i32
    %c0_i32_1 = arith.constant 0 : i32
    return %c0_i32, %c0_i32_0 : i32, i32
  }
  func.func @transform_3(%arg0: i32) -> (i32, i32) {
    %c0_i32 = arith.constant 0 : i32
    %c0_i32_0 = arith.constant 0 : i32
    %c0_i32_1 = arith.constant 0 : i32
    return %c0_i32, %c0_i32_0 : i32, i32
  }
  func.func @transform_4(%arg0: i32) -> (i32, i32) {
    %c0_i32 = arith.constant 0 : i32
    %c0_i32_0 = arith.constant 0 : i32
    %c0_i32_1 = arith.constant 0 : i32
    return %c0_i32, %c0_i32_0 : i32, i32
  }
  func.func @transform_5(%arg0: i32) -> (i32, i32) {
    %c0_i32 = arith.constant 0 : i32
    %c0_i32_0 = arith.constant 0 : i32
    %c0_i32_1 = arith.constant 0 : i32
    return %c0_i32, %c0_i32_0 : i32, i32
  }
  func.func @transform_6(%arg0: i32) -> (i32, i32) {
    %c0_i32 = arith.constant 0 : i32
    %c0_i32_0 = arith.constant 0 : i32
    %c0_i32_1 = arith.constant 0 : i32
    return %c0_i32, %c0_i32_0 : i32, i32
  }
  func.func @transform_7(%arg0: i32) -> (i32, i32, i32) {
    %c0_i32 = arith.constant 0 : i32
    %c0_i32_0 = arith.constant 0 : i32
    %c0_i32_1 = arith.constant 0 : i32
    return %arg0, %c0_i32, %c0_i32_0 : i32, i32, i32
  }
}

</mosaic_0001>

<llo_original>
// kernel: tpu_custom_call.1
$region0: #{tpu_custom_call.1}
  #allocation0 [shape = 'u32[]', space=smem, size = 0x4, offset = 0x4, fixed_abs, tag = 'smem constant byte address 0x4 - core index']
  #allocation1 [shape = 'u32[144,128]{1,0:T(1,128)}', space=vmem, size = 0x12000, scoped, tag = 'internal scratch']
  #allocation2 [shape = 'f32[9,9,16]{2,1,0:T(8,128)}', space=vmem, size = 0x12000, scoped, tag = 'scratch operand']
  #allocation3 [shape = 'f32[10,10,8]{2,1,0:T(8,128)}', space=vmem, size = 0x14000, scoped, tag = 'scratch operand']
  %s0 = inlined_call_operand.hbm [shape: f32[2,8,8,16], index: 0, kind: input, shape index: {}]
  %s1 = inlined_call_operand.vmem [shape: f32[36,8], index: 1, kind: input, shape index: {}]
  %s2 = inlined_call_operand.vmem [shape: f32[1,8], index: 2, kind: input, shape index: {}]
  %s3 = inlined_call_operand.vmem [shape: f32[72,8], index: 3, kind: input, shape index: {}]
  %s4 = inlined_call_operand.vmem [shape: f32[1,8], index: 4, kind: input, shape index: {}]
  %s5 = inlined_call_operand.vmem [shape: f32[4,8], index: 5, kind: input, shape index: {}]
  %s6 = inlined_call_operand.vmem [shape: f32[1,8], index: 6, kind: input, shape index: {}]
  %s7 = inlined_call_operand.hbm [shape: f32[2,8,64], index: 7, kind: output, shape index: {}]
  %s8 = sld [smem:[#allocation0]]
  $region65: #{tpu_custom_call.1} parent=0
    _
  %s10 = ssub.s32 1, %s8
  %s11 = scalar_select 0, %s10, %s8
  $region1: #{tpu_custom_call.1} parent=0
    #allocation4 [shape = 'u8[65536]{0}', space=vmem, size = 0x10000, scoped, tag = 'input window, operand 0']
    #allocation5 [shape = 's32[2]{0}', space=sflag, size = 0x8, scoped, tag = 'scoped memory for tpu_custom_call.1']
    #allocation6 [shape = 's32[2]{0}', space=sflag, size = 0x8, scoped, tag = 'scoped memory for tpu_custom_call.1']
    #allocation7 [shape = 'u8[8192]{0}', space=vmem, size = 0x2000, scoped, tag = 'output window, operand 0']
    %12 = vsyncpa [#allocation5], 0
    %s13 = scalar_lea.sflag [#allocation5], 1
    %14 = vsyncpa %s13, 0
    %15 = vsyncpa [#allocation6], 0
    %s16 = scalar_lea.sflag [#allocation6], 1
    %17 = vsyncpa %s16, 0
    loop: start=0, step=1, limit=4
    $region2: #{tpu_custom_call.1} parent=1 // loop_pre_header
      _
    $region3: #{tpu_custom_call.1} parent=1 // loop_header
      %s19 = sphi 0, %s23
      %p20 = scmp.ge.s32.totalorder %s19, 4
      %s29 = sphi 0, %s31
      %s32 = sphi 0, %s29
      %s33 = sphi 0, %s32
      %s49 = sphi 0, %s33
      %s53 = sphi 0, %s53
      %s55 = sphi 0, %s53
      %s56 = sphi 0, %s55
      %s70 = sphi 0, %s56
      %s74 = sphi 0, %s74
      %s76 = sphi 0, %s74
      %s77 = sphi 0, %s76
      %s91 = sphi 0, %s77
      %s95 = sphi 0, %s95
      %s97 = sphi 0, %s95
      %s98 = sphi 0, %s97
      %s112 = sphi 0, %s98
      %s116 = sphi 0, %s116
      %s118 = sphi 0, %s116
      %s119 = sphi 0, %s118
      %s133 = sphi 0, %s119
      %s137 = sphi 0, %s137
      %s139 = sphi 0, %s137
      %s140 = sphi 0, %s139
      %s154 = sphi 0, %s140
      %s158 = sphi 0, %s158
      %s160 = sphi 0, %s158
      %s161 = sphi 0, %s160
      %s175 = sphi 0, %s161
      %s181 = sphi 0, %s183
      %s184 = sphi 0, %s181
      %s185 = sphi 0, %s184
      %s201 = sphi 0, %s185
    $region4: #{tpu_custom_call.1} parent=1 // loop_header_branch
      %22 = sbr.rel (%p20) target = $region8
    $region5: #{tpu_custom_call.1} parent=1 // loop_body
      %s24 = ssub.s32 %s19, 1
      %s25 = ssub.s32 %s19, 2
      %s26 = sadd.s32 %s19, 1
      %s27 = ssub.s32 %s19, %s26
      %p28 = scmp.eq.s32.totalorder %s27, 0
      %s30 = sadd.s32 %s29, 1
      %s31 = scalar_select %p28, %s29, %s30
      %p34 = pneg %p28
      %p35 = scmp.eq.s32.totalorder %s19, 1
      %p36 = por %p34, %p35
      %p37 = scmp.ne.s32.totalorder %s29, %s32
      %p38 = scmp.eq.s32.totalorder %s19, 0
      %p39 = por %p37, %p38
      %p40 = scmp.ne.s32.totalorder %s29, %s32
      %p41 = scmp.eq.s32.totalorder %s24, 1
      %p42 = por %p40, %p41
      %p43 = scmp.ne.s32.totalorder %s32, %s33
      %p44 = scmp.eq.s32.totalorder %s24, 0
      %p45 = por %p43, %p44
      %p46 = scmp.ne.s32.totalorder %s32, %s33
      %p47 = scmp.eq.s32.totalorder %s25, 1
      %p48 = por %p46, %p47
      %p50 = scmp.ne.s32.totalorder %s33, %s49
      %p51 = scmp.eq.s32.totalorder %s25, 0
      %p52 = por %p50, %p51
      %s54 = sadd.s32 %s53, 1
      %p57 = scmp.eq.s32.totalorder %s19, 1
      %p58 = scmp.ne.s32.totalorder %s53, %s55
      %p59 = scmp.eq.s32.totalorder %s19, 0
      %p60 = por %p58, %p59
      %p61 = scmp.ne.s32.totalorder %s53, %s55
      %p62 = scmp.eq.s32.totalorder %s24, 1
      %p63 = por %p61, %p62
      %p64 = scmp.ne.s32.totalorder %s55, %s56
      %p65 = scmp.eq.s32.totalorder %s24, 0
      %p66 = por %p64, %p65
      %p67 = scmp.ne.s32.totalorder %s55, %s56
      %p68 = scmp.eq.s32.totalorder %s25, 1
      %p69 = por %p67, %p68
      %p71 = scmp.ne.s32.totalorder %s56, %s70
      %p72 = scmp.eq.s32.totalorder %s25, 0
      %p73 = por %p71, %p72
      %s75 = sadd.s32 %s74, 1
      %p78 = scmp.eq.s32.totalorder %s19, 1
      %p79 = scmp.ne.s32.totalorder %s74, %s76
      %p80 = scmp.eq.s32.totalorder %s19, 0
      %p81 = por %p79, %p80
      %p82 = scmp.ne.s32.totalorder %s74, %s76
      %p83 = scmp.eq.s32.totalorder %s24, 1
      %p84 = por %p82, %p83
      %p85 = scmp.ne.s32.totalorder %s76, %s77
      %p86 = scmp.eq.s32.totalorder %s24, 0
      %p87 = por %p85, %p86
      %p88 = scmp.ne.s32.totalorder %s76, %s77
      %p89 = scmp.eq.s32.totalorder %s25, 1
      %p90 = por %p88, %p89
      %p92 = scmp.ne.s32.totalorder %s77, %s91
      %p93 = scmp.eq.s32.totalorder %s25, 0
      %p94 = por %p92, %p93
      %s96 = sadd.s32 %s95, 1
      %p99 = scmp.eq.s32.totalorder %s19, 1
      %p100 = scmp.ne.s32.totalorder %s95, %s97
      %p101 = scmp.eq.s32.totalorder %s19, 0
      %p102 = por %p100, %p101
      %p103 = scmp.ne.s32.totalorder %s95, %s97
      %p104 = scmp.eq.s32.totalorder %s24, 1
      %p105 = por %p103, %p104
      %p106 = scmp.ne.s32.totalorder %s97, %s98
      %p107 = scmp.eq.s32.totalorder %s24, 0
      %p108 = por %p106, %p107
      %p109 = scmp.ne.s32.totalorder %s97, %s98
      %p110 = scmp.eq.s32.totalorder %s25, 1
      %p111 = por %p109, %p110
      %p113 = scmp.ne.s32.totalorder %s98, %s112
      %p114 = scmp.eq.s32.totalorder %s25, 0
      %p115 = por %p113, %p114
      %s117 = sadd.s32 %s116, 1
      %p120 = scmp.eq.s32.totalorder %s19, 1
      %p121 = scmp.ne.s32.totalorder %s116, %s118
      %p122 = scmp.eq.s32.totalorder %s19, 0
      %p123 = por %p121, %p122
      %p124 = scmp.ne.s32.totalorder %s116, %s118
      %p125 = scmp.eq.s32.totalorder %s24, 1
      %p126 = por %p124, %p125
      %p127 = scmp.ne.s32.totalorder %s118, %s119
      %p128 = scmp.eq.s32.totalorder %s24, 0
      %p129 = por %p127, %p128
      %p130 = scmp.ne.s32.totalorder %s118, %s119
      %p131 = scmp.eq.s32.totalorder %s25, 1
      %p132 = por %p130, %p131
      %p134 = scmp.ne.s32.totalorder %s119, %s133
      %p135 = scmp.eq.s32.totalorder %s25, 0
      %p136 = por %p134, %p135
      %s138 = sadd.s32 %s137, 1
      %p141 = scmp.eq.s32.totalorder %s19, 1
      %p142 = scmp.ne.s32.totalorder %s137, %s139
      %p143 = scmp.eq.s32.totalorder %s19, 0
      %p144 = por %p142, %p143
      %p145 = scmp.ne.s32.totalorder %s137, %s139
      %p146 = scmp.eq.s32.totalorder %s24, 1
      %p147 = por %p145, %p146
      %p148 = scmp.ne.s32.totalorder %s139, %s140
      %p149 = scmp.eq.s32.totalorder %s24, 0
      %p150 = por %p148, %p149
      %p151 = scmp.ne.s32.totalorder %s139, %s140
      %p152 = scmp.eq.s32.totalorder %s25, 1
      %p153 = por %p151, %p152
      %p155 = scmp.ne.s32.totalorder %s140, %s154
      %p156 = scmp.eq.s32.totalorder %s25, 0
      %p157 = por %p155, %p156
      %s159 = sadd.s32 %s158, 1
      %p162 = scmp.eq.s32.totalorder %s19, 1
      %p163 = scmp.ne.s32.totalorder %s158, %s160
      %p164 = scmp.eq.s32.totalorder %s19, 0
      %p165 = por %p163, %p164
      %p166 = scmp.ne.s32.totalorder %s158, %s160
      %p167 = scmp.eq.s32.totalorder %s24, 1
      %p168 = por %p166, %p167
      %p169 = scmp.ne.s32.totalorder %s160, %s161
      %p170 = scmp.eq.s32.totalorder %s24, 0
      %p171 = por %p169, %p170
      %p172 = scmp.ne.s32.totalorder %s160, %s161
      %p173 = scmp.eq.s32.totalorder %s25, 1
      %p174 = por %p172, %p173
      %p176 = scmp.ne.s32.totalorder %s161, %s175
      %p177 = scmp.eq.s32.totalorder %s25, 0
      %p178 = por %p176, %p177
      %s179 = ssub.s32 %s19, %s26
      %p180 = scmp.eq.s32.totalorder %s179, 0
      %s182 = sadd.s32 %s181, 1
      %s183 = scalar_select %p180, %s181, %s182
      %p186 = pneg %p180
      %p187 = scmp.eq.s32.totalorder %s19, 1
      %p188 = por %p186, %p187
      %p189 = scmp.ne.s32.totalorder %s181, %s184
      %p190 = scmp.eq.s32.totalorder %s19, 0
      %p191 = por %p189, %p190
      %p192 = scmp.ne.s32.totalorder %s181, %s184
      %p193 = scmp.eq.s32.totalorder %s24, 1
      %p194 = por %p192, %p193
      %p195 = scmp.ne.s32.totalorder %s184, %s185
      %p196 = scmp.eq.s32.totalorder %s24, 0
      %p197 = por %p195, %p196
      %p198 = scmp.ne.s32.totalorder %s184, %s185
      %p199 = scmp.eq.s32.totalorder %s25, 1
      %p200 = por %p198, %p199
      %p202 = scmp.ne.s32.totalorder %s185, %s201
      %p203 = scmp.eq.s32.totalorder %s25, 0
      %p204 = por %p202, %p203
      %p205 = scmp.le.s32.totalorder 1, %s19
      %p206 = scmp.lt.s32.totalorder %s19, 3
      %p207 = pnand %p205, %p206
      %p208 = pneg %p207
      // Predicated region
      $region9: #{tpu_custom_call.1} parent=5 // pred_check
        _
      $region10: #{tpu_custom_call.1} parent=5 // pred_check_branch
        %210 = sbr.rel (%p207) target = $region12
      $region11: #{tpu_custom_call.1} parent=5 // pred_region
        %s211 = ssub.s32 %s19, 1
        // Predicated region
        $region13: #{tpu_custom_call.1} parent=11 // pred_check
          %p212 = pneg %p66
        $region14: #{tpu_custom_call.1} parent=11 // pred_check_branch
          %214 = sbr.rel (%p212) target = $region16
        $region15: #{tpu_custom_call.1} parent=11 // pred_region
          _
        $region16: #{tpu_custom_call.1} parent=11 // pred_fallthru
          _
        // Predicated region
        $region17: #{tpu_custom_call.1} parent=11 // pred_check
          %p215 = pneg %p87
        $region18: #{tpu_custom_call.1} parent=11 // pred_check_branch
          %217 = sbr.rel (%p215) target = $region20
        $region19: #{tpu_custom_call.1} parent=11 // pred_region
          _
        $region20: #{tpu_custom_call.1} parent=11 // pred_fallthru
          _
        // Predicated region
        $region21: #{tpu_custom_call.1} parent=11 // pred_check
          %p218 = pneg %p108
        $region22: #{tpu_custom_call.1} parent=11 // pred_check_branch
          %220 = sbr.rel (%p218) target = $region24
        $region23: #{tpu_custom_call.1} parent=11 // pred_region
          _
        $region24: #{tpu_custom_call.1} parent=11 // pred_fallthru
          _
        // Predicated region
        $region25: #{tpu_custom_call.1} parent=11 // pred_check
          %p221 = pneg %p129
        $region26: #{tpu_custom_call.1} parent=11 // pred_check_branch
          %223 = sbr.rel (%p221) target = $region28
        $region27: #{tpu_custom_call.1} parent=11 // pred_region
          _
        $region28: #{tpu_custom_call.1} parent=11 // pred_fallthru
          _
        // Predicated region
        $region29: #{tpu_custom_call.1} parent=11 // pred_check
          %p224 = pneg %p150
        $region30: #{tpu_custom_call.1} parent=11 // pred_check_branch
          %226 = sbr.rel (%p224) target = $region32
        $region31: #{tpu_custom_call.1} parent=11 // pred_region
          _
        $region32: #{tpu_custom_call.1} parent=11 // pred_fallthru
          _
        // Predicated region
        $region33: #{tpu_custom_call.1} parent=11 // pred_check
          %p227 = pneg %p171
        $region34: #{tpu_custom_call.1} parent=11 // pred_check_branch
          %229 = sbr.rel (%p227) target = $region36
        $region35: #{tpu_custom_call.1} parent=11 // pred_region
          _
        $region36: #{tpu_custom_call.1} parent=11 // pred_fallthru
          _
      $region12: #{tpu_custom_call.1} parent=5 // pred_fallthru
        _
      %p230 = scmp.lt.s32.totalorder %s19, 2
      // Predicated region
      $region37: #{tpu_custom_call.1} parent=5 // pred_check
        %p231 = pneg %p230
      $region38: #{tpu_custom_call.1} parent=5 // pred_check_branch
        %233 = sbr.rel (%p231) target = $region40
      $region39: #{tpu_custom_call.1} parent=5 // pred_region
        // Predicated region
        $region41: #{tpu_custom_call.1} parent=39 // pred_check
          %p234 = pneg %p39
        $region42: #{tpu_custom_call.1} parent=39 // pred_check_branch
          %236 = sbr.rel (%p234) target = $region44
        $region43: #{tpu_custom_call.1} parent=39 // pred_region
          %s237 = sand.u32 %s29, 1
          %s238 = scalar_lea.sflag [#allocation5], %s237
          %s239 = sand.u32 %s29, 1
          %s240 = smul.addr %s239, 64
          %s241 = scalar_lea.vmem [#allocation4], %s240
          %s243 = ssub.s32 1024, 1024
          %244 = vsyncadd %s238, %s243
          %s245 = smul.addr %s19, 8
          %s246 = smul.addr %s245, 128
          %s247 = scalar_lea.hbm %s0, %s246
          %s248 = sshll.u32 %s241, 4
          %s249 = int_to_ptr.vmem [resolvable:$true] %s248
          %254 = dma.hbm_to_vmem [thread:$0]  %s247, 1024, %s249, %s238, 128, 128, 8
        $region44: #{tpu_custom_call.1} parent=39 // pred_fallthru
          _
      $region40: #{tpu_custom_call.1} parent=5 // pred_fallthru
        _
      %p255 = scmp.le.s32.totalorder 1, %s19
      %p256 = scmp.lt.s32.totalorder %s19, 3
      %p257 = pnand %p255, %p256
      %p258 = pneg %p257
      // Predicated region
      $region45: #{tpu_custom_call.1} parent=5 // pred_check
        _
      $region46: #{tpu_custom_call.1} parent=5 // pred_check_branch
        %260 = sbr.rel (%p257) target = $region48
      $region47: #{tpu_custom_call.1} parent=5 // pred_region
        %s261 = ssub.s32 %s19, 1
        %s262 = sand.u32 %s32, 1
        %s263 = scalar_lea.sflag [#allocation5], %s262
        %s264 = sand.u32 %s32, 1
        %s265 = smul.addr %s264, 64
        %s266 = scalar_lea.vmem [#allocation4], %s265
        // Predicated region
        $region49: #{tpu_custom_call.1} parent=47 // pred_check
          %p267 = pneg %p45
        $region50: #{tpu_custom_call.1} parent=47 // pred_check_branch
          %269 = sbr.rel (%p267) target = $region52
        $region51: #{tpu_custom_call.1} parent=47 // pred_region
          %270 = dma.done %s263, 1024
        $region52: #{tpu_custom_call.1} parent=47 // pred_fallthru
          _
        %s271 = sand.u32 %s32, 1
        %s272 = scalar_lea.sflag [#allocation5], %s271
        %s273 = sand.u32 %s32, 1
        %s274 = smul.addr %s273, 64
        %s275 = scalar_lea.vmem [#allocation4], %s274
        %p276 = pneg %p45
        %p277 = pneg %p42
        %p278 = pneg %p66
        %p279 = pneg %p63
        %p280 = pneg %p87
        %p281 = pneg %p84
        %p282 = pneg %p108
        %p283 = pneg %p105
        %p284 = pneg %p129
        %p285 = pneg %p126
        %p286 = pneg %p150
        %p287 = pneg %p147
        %p288 = pneg %p171
        %p289 = pneg %p168
        %p290 = pneg %p197
        %p291 = pneg %p194
        %s292 = sand.u32 %s184, 1
        %s293 = scalar_lea.sflag [#allocation6], %s292
        %s294 = sand.u32 %s184, 1
        %s295 = smul.addr %s294, 8
        %s296 = scalar_lea.vmem [#allocation7], %s295
        %v297 = vld [vmem:[%s266] sm:$0xff]
        %v298 = vld [vmem:[%s266 + $0x8] sm:$0xff]
        %v299 = vld [vmem:[%s266 + $0x10] sm:$0xff]
        %v300 = vld [vmem:[%s266 + $0x18] sm:$0xff]
        %v301 = vld [vmem:[%s266 + $0x20] sm:$0xff]
        %v302 = vld [vmem:[%s266 + $0x28] sm:$0xff]
        %v303 = vld [vmem:[%s266 + $0x30] sm:$0xff]
        %v304 = vld [vmem:[%s266 + $0x38] sm:$0xff]
        %vm305 = vcmask 130048
        %306 = vst.msk [vmem:[#allocation2] sm:$0xff] %vm305, 0.0
        %vm307 = vcmask 122880
        %308 = vst.msk [vmem:[#allocation2 + $0x8] sm:$0x1] %vm307, 0.0
        %309 = vst.msk [vmem:[#allocation2 + $0x10] sm:$0xff] %vm305, 0.0
        %310 = vst.msk [vmem:[#allocation2 + $0x18] sm:$0x1] %vm307, 0.0
        %311 = vst.msk [vmem:[#allocation2 + $0x20] sm:$0xff] %vm305, 0.0
        %312 = vst.msk [vmem:[#allocation2 + $0x28] sm:$0x1] %vm307, 0.0
        %313 = vst.msk [vmem:[#allocation2 + $0x30] sm:$0xff] %vm305, 0.0
        %314 = vst.msk [vmem:[#allocation2 + $0x38] sm:$0x1] %vm307, 0.0
        %315 = vst.msk [vmem:[#allocation2 + $0x40] sm:$0xff] %vm305, 0.0
        %316 = vst.msk [vmem:[#allocation2 + $0x48] sm:$0x1] %vm307, 0.0
        %317 = vst.msk [vmem:[#allocation2 + $0x50] sm:$0xff] %vm305, 0.0
        %318 = vst.msk [vmem:[#allocation2 + $0x58] sm:$0x1] %vm307, 0.0
        %319 = vst.msk [vmem:[#allocation2 + $0x60] sm:$0xff] %vm305, 0.0
        %320 = vst.msk [vmem:[#allocation2 + $0x68] sm:$0x1] %vm307, 0.0
        %321 = vst.msk [vmem:[#allocation2 + $0x70] sm:$0xff] %vm305, 0.0
        %322 = vst.msk [vmem:[#allocation2 + $0x78] sm:$0x1] %vm307, 0.0
        %323 = vst.msk [vmem:[#allocation2 + $0x80] sm:$0xff] %vm305, 0.0
        %324 = vst.msk [vmem:[#allocation2 + $0x88] sm:$0x1] %vm307, 0.0
        %s325 = scalar_lea.vmem [#allocation2], 16
        %326 = vst.msk [vmem:[%s325 + $0x1] sm:$0xff] %vm305, %v297
        %327 = vst.msk [vmem:[%s325 + $0x11] sm:$0xff] %vm305, %v298
        %328 = vst.msk [vmem:[%s325 + $0x21] sm:$0xff] %vm305, %v299
        %329 = vst.msk [vmem:[%s325 + $0x31] sm:$0xff] %vm305, %v300
        %330 = vst.msk [vmem:[%s325 + $0x41] sm:$0xff] %vm305, %v301
        %331 = vst.msk [vmem:[%s325 + $0x51] sm:$0xff] %vm305, %v302
        %332 = vst.msk [vmem:[%s325 + $0x61] sm:$0xff] %vm305, %v303
        %333 = vst.msk [vmem:[%s325 + $0x71] sm:$0xff] %vm305, %v304
        %v334 = vld [vmem:[#allocation2] sm:$0xff]
        %v335 = vld [vmem:[#allocation2 + $0x8] sm:$0x1]
        %v336 = vld [vmem:[#allocation2 + $0x10] sm:$0xff]
        %v337 = vld [vmem:[#allocation2 + $0x18] sm:$0x1]
        %v338 = vld [vmem:[#allocation2 + $0x20] sm:$0xff]
        %v339 = vld [vmem:[#allocation2 + $0x28] sm:$0x1]
        %v340 = vld [vmem:[#allocation2 + $0x30] sm:$0xff]
        %v341 = vld [vmem:[#allocation2 + $0x38] sm:$0x1]
        %v342 = vld [vmem:[#allocation2 + $0x40] sm:$0xff]
        %v343 = vld [vmem:[#allocation2 + $0x48] sm:$0x1]
        %v344 = vld [vmem:[#allocation2 + $0x50] sm:$0xff]
        %v345 = vld [vmem:[#allocation2 + $0x58] sm:$0x1]
        %v346 = vld [vmem:[#allocation2 + $0x60] sm:$0xff]
        %v347 = vld [vmem:[#allocation2 + $0x68] sm:$0x1]
        %v348 = vld [vmem:[#allocation2 + $0x70] sm:$0xff]
        %v349 = vld [vmem:[#allocation2 + $0x78] sm:$0x1]
        %v350 = vld [vmem:[#allocation2 + $0x80] sm:$0xff]
        %v351 = vld [vmem:[#allocation2 + $0x88] sm:$0x1]
        %vm368 = vcmask 1046528
        %v369 = vrot.slane %v334, 1
        %v370 = vrot.slane %v335, 1
        %v371 = vsel %vm368, %v369, %v370
        %v372 = vrot.slane %v336, 1
        %v373 = vrot.slane %v337, 1
        %v374 = vsel %vm368, %v372, %v373
        %v375 = vrot.slane %v338, 1
        %v376 = vrot.slane %v339, 1
        %v377 = vsel %vm368, %v375, %v376
        %v378 = vrot.slane %v340, 1
        %v379 = vrot.slane %v341, 1
        %v380 = vsel %vm368, %v378, %v379
        %v381 = vrot.slane %v342, 1
        %v382 = vrot.slane %v343, 1
        %v383 = vsel %vm368, %v381, %v382
        %v384 = vrot.slane %v344, 1
        %v385 = vrot.slane %v345, 1
        %v386 = vsel %vm368, %v384, %v385
        %v387 = vrot.slane %v346, 1
        %v388 = vrot.slane %v347, 1
        %v389 = vsel %vm368, %v387, %v388
        %v390 = vrot.slane %v348, 1
        %v391 = vrot.slane %v349, 1
        %v392 = vsel %vm368, %v390, %v391
        %v395 = vrot.slane %v350, 1
        %v396 = vrot.slane %v351, 1
        %v397 = vsel %vm368, %v395, %v396
        %398 = vrot.lane.b32.xlu0 %v334, 116
        %v399 = vpop.permute.xlu0 %398
        %400 = vrot.lane.b32.xlu0 %v336, 116
        %v401 = vpop.permute.xlu0 %400
        %402 = vrot.lane.b32.xlu0 %v338, 116
        %v403 = vpop.permute.xlu0 %402
        %404 = vrot.lane.b32.xlu0 %v340, 116
        %v405 = vpop.permute.xlu0 %404
        %406 = vrot.lane.b32.xlu0 %v342, 116
        %v407 = vpop.permute.xlu0 %406
        %408 = vrot.lane.b32.xlu0 %v344, 116
        %v409 = vpop.permute.xlu0 %408
        %410 = vrot.lane.b32.xlu0 %v346, 116
        %v411 = vpop.permute.xlu0 %410
        %412 = vrot.lane.b32.xlu0 %v348, 116
        %v413 = vpop.permute.xlu0 %412
        %422 = vrot.lane.b32.xlu0 %v371, 124
        %v423 = vpop.permute.xlu0 %422
        %424 = vrot.lane.b32.xlu0 %v374, 124
        %v425 = vpop.permute.xlu0 %424
        %426 = vrot.lane.b32.xlu0 %v377, 124
        %v427 = vpop.permute.xlu0 %426
        %428 = vrot.lane.b32.xlu0 %v380, 124
        %v429 = vpop.permute.xlu0 %428
        %430 = vrot.lane.b32.xlu0 %v383, 124
        %v431 = vpop.permute.xlu0 %430
        %432 = vrot.lane.b32.xlu0 %v386, 124
        %v433 = vpop.permute.xlu0 %432
        %434 = vrot.lane.b32.xlu0 %v389, 124
        %v435 = vpop.permute.xlu0 %434
        %436 = vrot.lane.b32.xlu0 %v392, 124
        %v437 = vpop.permute.xlu0 %436
        %446 = vrot.lane.b32.xlu0 %v336, 8
        %v447 = vpop.permute.xlu0 %446
        %448 = vrot.lane.b32.xlu0 %v338, 8
        %v449 = vpop.permute.xlu0 %448
        %450 = vrot.lane.b32.xlu0 %v340, 8
        %v451 = vpop.permute.xlu0 %450
        %452 = vrot.lane.b32.xlu0 %v342, 8
        %v453 = vpop.permute.xlu0 %452
        %454 = vrot.lane.b32.xlu0 %v344, 8
        %v455 = vpop.permute.xlu0 %454
        %456 = vrot.lane.b32.xlu0 %v346, 8
        %v457 = vpop.permute.xlu0 %456
        %458 = vrot.lane.b32.xlu0 %v348, 8
        %v459 = vpop.permute.xlu0 %458
        %460 = vrot.lane.b32.xlu0 %v350, 8
        %v461 = vpop.permute.xlu0 %460
        %470 = vrot.lane.b32.xlu0 %v374, 16
        %v471 = vpop.permute.xlu0 %470
        %472 = vrot.lane.b32.xlu0 %v377, 16
        %v473 = vpop.permute.xlu0 %472
        %474 = vrot.lane.b32.xlu0 %v380, 16
        %v475 = vpop.permute.xlu0 %474
        %476 = vrot.lane.b32.xlu0 %v383, 16
        %v477 = vpop.permute.xlu0 %476
        %478 = vrot.lane.b32.xlu0 %v386, 16
        %v479 = vpop.permute.xlu0 %478
        %480 = vrot.lane.b32.xlu0 %v389, 16
        %v481 = vpop.permute.xlu0 %480
        %482 = vrot.lane.b32.xlu0 %v392, 16
        %v483 = vpop.permute.xlu0 %482
        %484 = vrot.lane.b32.xlu0 %v397, 16
        %v485 = vpop.permute.xlu0 %484
        %494 = vrot.lane.b32.xlu0 %v336, 12
        %v495 = vpop.permute.xlu0 %494
        %496 = vrot.lane.b32.xlu0 %v338, 12
        %v497 = vpop.permute.xlu0 %496
        %498 = vrot.lane.b32.xlu0 %v340, 12
        %v499 = vpop.permute.xlu0 %498
        %500 = vrot.lane.b32.xlu0 %v342, 12
        %v501 = vpop.permute.xlu0 %500
        %502 = vrot.lane.b32.xlu0 %v344, 12
        %v503 = vpop.permute.xlu0 %502
        %504 = vrot.lane.b32.xlu0 %v346, 12
        %v505 = vpop.permute.xlu0 %504
        %506 = vrot.lane.b32.xlu0 %v348, 12
        %v507 = vpop.permute.xlu0 %506
        %508 = vrot.lane.b32.xlu0 %v350, 12
        %v509 = vpop.permute.xlu0 %508
        %518 = vrot.lane.b32.xlu0 %v374, 20
        %v519 = vpop.permute.xlu0 %518
        %520 = vrot.lane.b32.xlu0 %v377, 20
        %v521 = vpop.permute.xlu0 %520
        %522 = vrot.lane.b32.xlu0 %v380, 20
        %v523 = vpop.permute.xlu0 %522
        %524 = vrot.lane.b32.xlu0 %v383, 20
        %v525 = vpop.permute.xlu0 %524
        %526 = vrot.lane.b32.xlu0 %v386, 20
        %v527 = vpop.permute.xlu0 %526
        %528 = vrot.lane.b32.xlu0 %v389, 20
        %v529 = vpop.permute.xlu0 %528
        %530 = vrot.lane.b32.xlu0 %v392, 20
        %v531 = vpop.permute.xlu0 %530
        %532 = vrot.lane.b32.xlu0 %v397, 20
        %v533 = vpop.permute.xlu0 %532
        %vm542 = vcmask 31744
        %v543 = vsel %vm542, %v399, %v423
        %v544 = vsel %vm542, %v401, %v425
        %v545 = vsel %vm542, %v403, %v427
        %v546 = vsel %vm542, %v405, %v429
        %v547 = vsel %vm542, %v407, %v431
        %v548 = vsel %vm542, %v409, %v433
        %v549 = vsel %vm542, %v411, %v435
        %v550 = vsel %vm542, %v413, %v437
        %vm551 = vcmask 64512
        %v552 = vsel %vm551, %v543, %v423
        %v553 = vsel %vm551, %v544, %v425
        %v554 = vsel %vm551, %v545, %v427
        %v555 = vsel %vm551, %v546, %v429
        %v556 = vsel %vm551, %v547, %v431
        %v557 = vsel %vm551, %v548, %v433
        %v558 = vsel %vm551, %v549, %v435
        %v559 = vsel %vm551, %v550, %v437
        %vm560 = vcmask 97280
        %v561 = vsel %vm560, %v552, %v447
        %v562 = vsel %vm560, %v553, %v449
        %v563 = vsel %vm560, %v554, %v451
        %v564 = vsel %vm560, %v555, %v453
        %v565 = vsel %vm560, %v556, %v455
        %v566 = vsel %vm560, %v557, %v457
        %v567 = vsel %vm560, %v558, %v459
        %v568 = vsel %vm560, %v559, %v461
        %v569 = vsel %vm305, %v561, %v471
        %v570 = vsel %vm305, %v562, %v473
        %v571 = vsel %vm305, %v563, %v475
        %v572 = vsel %vm305, %v564, %v477
        %v573 = vsel %vm305, %v565, %v479
        %v574 = vsel %vm305, %v566, %v481
        %v575 = vsel %vm305, %v567, %v483
        %v576 = vsel %vm305, %v568, %v485
        %vm577 = vcmask 162816
        %v578 = vsel %vm577, %v569, %v471
        %v579 = vsel %vm577, %v570, %v473
        %v580 = vsel %vm577, %v571, %v475
        %v581 = vsel %vm577, %v572, %v477
        %v582 = vsel %vm577, %v573, %v479
        %v583 = vsel %vm577, %v574, %v481
        %v584 = vsel %vm577, %v575, %v483
        %v585 = vsel %vm577, %v576, %v485
        %vm586 = vcmask 195584
        %v587 = vsel %vm586, %v578, %v495
        %v588 = vsel %vm586, %v579, %v497
        %v589 = vsel %vm586, %v580, %v499
        %v590 = vsel %vm586, %v581, %v501
        %v591 = vsel %vm586, %v582, %v503
        %v592 = vsel %vm586, %v583, %v505
        %v593 = vsel %vm586, %v584, %v507
        %v594 = vsel %vm586, %v585, %v509
        %vm595 = vcmask 228352
        %v596 = vsel %vm595, %v587, %v519
        %v597 = vsel %vm595, %v588, %v521
        %v598 = vsel %vm595, %v589, %v523
        %v599 = vsel %vm595, %v590, %v525
        %v600 = vsel %vm595, %v591, %v527
        %v601 = vsel %vm595, %v592, %v529
        %v602 = vsel %vm595, %v593, %v531
        %v603 = vsel %vm595, %v594, %v533
        %vm604 = vcmask 261120
        %v605 = vsel %vm604, %v596, %v519
        %v606 = vsel %vm604, %v597, %v521
        %v607 = vsel %vm604, %v598, %v523
        %v608 = vsel %vm604, %v599, %v525
        %v609 = vsel %vm604, %v600, %v527
        %v610 = vsel %vm604, %v601, %v529
        %v611 = vsel %vm604, %v602, %v531
        %v612 = vsel %vm604, %v603, %v533
        %v613 = vld [vmem:[%s1] sm:$0xff]
        %v614 = vld [vmem:[%s1 + $0x8] sm:$0xff]
        %v615 = vld [vmem:[%s1 + $0x10] sm:$0xff]
        %v616 = vld [vmem:[%s1 + $0x18] sm:$0xff]
        %v617 = vld [vmem:[%s1 + $0x20] sm:$0xf]
        %v618 = vld [vmem:[%s2] sm:$0x1]
        %v620 = vlaneseq
        %v621 = vshrl.u32 %v620, 7
        %v622 = vsub.s32 0, %v621
        %v623 = vrot.slane %v618, %v622
        %vm625 = vcmask 293888
        %v627 = vsel %vm625, %v605, 0
        %v630 = vsel %vm625, %v606, 0
        %v633 = vsel %vm625, %v607, 0
        %v636 = vsel %vm625, %v608, 0
        %v639 = vsel %vm625, %v609, 0
        %v642 = vsel %vm625, %v610, 0
        %v645 = vsel %vm625, %v611, 0
        %v648 = vsel %vm625, %v612, 0
        %vm650 = vcmask 1043456
        %v652 = vsel %vm650, %v617, 0
        %654 = vmatprep.subr.mxu0 0.0
        %655 = vmatpush1.msra.mxu0 0.0
        %656 = vmatprep.subr.mxu0 0.0
        %657 = vmatpush1.msra.mxu0 0.0
        %658 = vmatprep.subr.mxu0 0.0
        %659 = vmatpush1.msra.mxu0 0.0
        %660 = vmatprep.subr.mxu0 0.0
        %661 = vmatpush1.msra.mxu0 0.0
        %662 = vmatprep.subr.mxu0 0.0
        %663 = vmatpush1.msra.mxu0 0.0
        %664 = vmatprep.subr.mxu0 0.0
        %665 = vmatpush1.msra.mxu0 0.0
        %666 = vmatprep.subr.mxu0 0.0
        %667 = vmatpush1.msra.mxu0 0.0
        %668 = vmatprep.subr.mxu0 0.0
        %669 = vmatpush1.msra.mxu0 0.0
        %670 = vmatprep.subr.mxu0 0.0
        %671 = vmatpush1.msra.mxu0 0.0
        %672 = vmatprep.subr.mxu0 0.0
        %673 = vmatpush1.msra.mxu0 0.0
        %674 = vmatprep.subr.mxu0 0.0
        %675 = vmatpush1.msra.mxu0 0.0
        %676 = vmatprep.subr.mxu0 0.0
        %677 = vmatpush1.msra.mxu0 %v652
        %678 = vmatprep.subr.mxu0 0.0
        %679 = vmatpush1.msra.mxu0 %v616
        %680 = vmatprep.subr.mxu0 0.0
        %681 = vmatpush1.msra.mxu0 %v615
        %682 = vmatprep.subr.mxu0 0.0
        %683 = vmatpush1.msra.mxu0 %v614
        %684 = vmatprep.subr.mxu0 0.0
        %685 = vmatpush1.msra.mxu0 %v613
        %686 = vmatprep.subr.mxu0 0.0
        %687 = vmatpush2.msra.mxu0 0.0
        %688 = vmatprep.subr.mxu0 0.0
        %689 = vmatpush2.msra.mxu0 0.0
        %690 = vmatprep.subr.mxu0 0.0
        %691 = vmatpush2.msra.mxu0 0.0
        %692 = vmatprep.subr.mxu0 0.0
        %693 = vmatpush2.msra.mxu0 0.0
        %694 = vmatprep.subr.mxu0 0.0
        %695 = vmatpush2.msra.mxu0 0.0
        %696 = vmatprep.subr.mxu0 0.0
        %697 = vmatpush2.msra.mxu0 0.0
        %698 = vmatprep.subr.mxu0 0.0
        %699 = vmatpush2.msra.mxu0 0.0
        %700 = vmatprep.subr.mxu0 0.0
        %701 = vmatpush2.msra.mxu0 0.0
        %702 = vmatprep.subr.mxu0 0.0
        %703 = vmatpush2.msra.mxu0 0.0
        %704 = vmatprep.subr.mxu0 0.0
        %705 = vmatpush2.msra.mxu0 0.0
        %706 = vmatprep.subr.mxu0 0.0
        %707 = vmatpush2.msra.mxu0 0.0
        %708 = vmatprep.subr.mxu0 0.0
        %709 = vmatpush2.msra.mxu0 0.0
        %710 = vmatprep.subr.mxu0 0.0
        %711 = vmatpush2.msra.mxu0 0.0
        %712 = vmatprep.subr.mxu0 0.0
        %713 = vmatpush2.msra.mxu0 0.0
        %714 = vmatprep.subr.mxu0 0.0
        %715 = vmatpush2.msra.mxu0 0.0
        %716 = vmatprep.subr.mxu0 0.0
        %717 = vmatpush2.msra.mxu0 0.0
        %718 = vmatprep.mubr.f32.mxu0 0.0
        %719 = vmatmul.mubr.f32.gmra.mxu0 %v627
        %v720 = vpop.f32.mrf.mxu0
        %v721 = vadd.f32 %v623, %v720
        %v722 = vpop.f32.mrf.mxu0
        %723 = vmatprep.mubr.f32.mxu0 0.0
        %724 = vmatmul.mubr.f32.gmra.mxu0 %v630
        %v725 = vpop.f32.mrf.mxu0
        %v726 = vadd.f32 %v623, %v725
        %v727 = vpop.f32.mrf.mxu0
        %728 = vmatprep.mubr.f32.mxu0 0.0
        %729 = vmatmul.mubr.f32.gmra.mxu0 %v633
        %v730 = vpop.f32.mrf.mxu0
        %v731 = vadd.f32 %v623, %v730
        %v732 = vpop.f32.mrf.mxu0
        %733 = vmatprep.mubr.f32.mxu0 0.0
        %734 = vmatmul.mubr.f32.gmra.mxu0 %v636
        %v735 = vpop.f32.mrf.mxu0
        %v736 = vadd.f32 %v623, %v735
        %v737 = vpop.f32.mrf.mxu0
        %738 = vmatprep.mubr.f32.mxu0 0.0
        %739 = vmatmul.mubr.f32.gmra.mxu0 %v639
        %v740 = vpop.f32.mrf.mxu0
        %v741 = vadd.f32 %v623, %v740
        %v742 = vpop.f32.mrf.mxu0
        %743 = vmatprep.mubr.f32.mxu0 0.0
        %744 = vmatmul.mubr.f32.gmra.mxu0 %v642
        %v745 = vpop.f32.mrf.mxu0
        %v746 = vadd.f32 %v623, %v745
        %v747 = vpop.f32.mrf.mxu0
        %748 = vmatprep.mubr.f32.mxu0 0.0
        %749 = vmatmul.mubr.f32.gmra.mxu0 %v645
        %v750 = vpop.f32.mrf.mxu0
        %v751 = vadd.f32 %v623, %v750
        %v752 = vpop.f32.mrf.mxu0
        %753 = vmatprep.mubr.f32.mxu0 0.0
        %754 = vmatmul.mubr.f32.gmra.mxu0 %v648
        %v755 = vpop.f32.mrf.mxu0
        %v756 = vadd.f32 %v623, %v755
        %v757 = vpop.f32.mrf.mxu0
        %758 = vdwg.mxu0
        %v759 = vmax.f32 %v721, 0.0
        %v760 = vmax.f32 %v726, 0.0
        %v761 = vmax.f32 %v731, 0.0
        %v762 = vmax.f32 %v736, 0.0
        %v763 = vmax.f32 %v741, 0.0
        %v764 = vmax.f32 %v746, 0.0
        %v765 = vmax.f32 %v751, 0.0
        %v766 = vmax.f32 %v756, 0.0
        %767 = vst.msk [vmem:[#allocation3] sm:$0xff] %vm551, 0.0
        %vm768 = vcmask 58368
        %769 = vst.msk [vmem:[#allocation3 + $0x8] sm:$0x3] %vm768, 0.0
        %770 = vst.msk [vmem:[#allocation3 + $0x10] sm:$0xff] %vm551, 0.0
        %771 = vst.msk [vmem:[#allocation3 + $0x18] sm:$0x3] %vm768, 0.0
        %772 = vst.msk [vmem:[#allocation3 + $0x20] sm:$0xff] %vm551, 0.0
        %773 = vst.msk [vmem:[#allocation3 + $0x28] sm:$0x3] %vm768, 0.0
        %774 = vst.msk [vmem:[#allocation3 + $0x30] sm:$0xff] %vm551, 0.0
        %775 = vst.msk [vmem:[#allocation3 + $0x38] sm:$0x3] %vm768, 0.0
        %776 = vst.msk [vmem:[#allocation3 + $0x40] sm:$0xff] %vm551, 0.0
        %777 = vst.msk [vmem:[#allocation3 + $0x48] sm:$0x3] %vm768, 0.0
        %778 = vst.msk [vmem:[#allocation3 + $0x50] sm:$0xff] %vm551, 0.0
        %779 = vst.msk [vmem:[#allocation3 + $0x58] sm:$0x3] %vm768, 0.0
        %780 = vst.msk [vmem:[#allocation3 + $0x60] sm:$0xff] %vm551, 0.0
        %781 = vst.msk [vmem:[#allocation3 + $0x68] sm:$0x3] %vm768, 0.0
        %782 = vst.msk [vmem:[#allocation3 + $0x70] sm:$0xff] %vm551, 0.0
        %783 = vst.msk [vmem:[#allocation3 + $0x78] sm:$0x3] %vm768, 0.0
        %784 = vst.msk [vmem:[#allocation3 + $0x80] sm:$0xff] %vm551, 0.0
        %785 = vst.msk [vmem:[#allocation3 + $0x88] sm:$0x3] %vm768, 0.0
        %786 = vst.msk [vmem:[#allocation3 + $0x90] sm:$0xff] %vm551, 0.0
        %787 = vst.msk [vmem:[#allocation3 + $0x98] sm:$0x3] %vm768, 0.0
        %s788 = scalar_lea.vmem [#allocation3], 16
        %789 = vst.msk [vmem:[%s788 + $0x1] sm:$0xff] %vm551, %v759
        %790 = vst.msk [vmem:[%s788 + $0x11] sm:$0xff] %vm551, %v760
        %791 = vst.msk [vmem:[%s788 + $0x21] sm:$0xff] %vm551, %v761
        %792 = vst.msk [vmem:[%s788 + $0x31] sm:$0xff] %vm551, %v762
        %793 = vst.msk [vmem:[%s788 + $0x41] sm:$0xff] %vm551, %v763
        %794 = vst.msk [vmem:[%s788 + $0x51] sm:$0xff] %vm551, %v764
        %795 = vst.msk [vmem:[%s788 + $0x61] sm:$0xff] %vm551, %v765
        %796 = vst.msk [vmem:[%s788 + $0x71] sm:$0xff] %vm551, %v766
        %v797 = vld [vmem:[#allocation3] sm:$0xff]
        %v798 = vld [vmem:[#allocation3 + $0x8] sm:$0x3]
        %v799 = vld [vmem:[#allocation3 + $0x10] sm:$0xff]
        %v800 = vld [vmem:[#allocation3 + $0x18] sm:$0x3]
        %v801 = vld [vmem:[#allocation3 + $0x20] sm:$0xff]
        %v802 = vld [vmem:[#allocation3 + $0x28] sm:$0x3]
        %v803 = vld [vmem:[#allocation3 + $0x30] sm:$0xff]
        %v804 = vld [vmem:[#allocation3 + $0x38] sm:$0x3]
        %v805 = vld [vmem:[#allocation3 + $0x40] sm:$0xff]
        %v806 = vld [vmem:[#allocation3 + $0x48] sm:$0x3]
        %v807 = vld [vmem:[#allocation3 + $0x50] sm:$0xff]
        %v808 = vld [vmem:[#allocation3 + $0x58] sm:$0x3]
        %v809 = vld [vmem:[#allocation3 + $0x60] sm:$0xff]
        %v810 = vld [vmem:[#allocation3 + $0x68] sm:$0x3]
        %v811 = vld [vmem:[#allocation3 + $0x70] sm:$0xff]
        %v812 = vld [vmem:[#allocation3 + $0x78] sm:$0x3]
        %v813 = vld [vmem:[#allocation3 + $0x80] sm:$0xff]
        %v814 = vld [vmem:[#allocation3 + $0x88] sm:$0x3]
        %v815 = vld [vmem:[#allocation3 + $0x90] sm:$0xff]
        %v816 = vld [vmem:[#allocation3 + $0x98] sm:$0x3]
        %v833 = vrot.slane %v797, 1
        %v834 = vrot.slane %v798, 1
        %v835 = vsel %vm368, %v833, %v834
        %v836 = vrot.slane %v799, 1
        %v837 = vrot.slane %v800, 1
        %v838 = vsel %vm368, %v836, %v837
        %v839 = vrot.slane %v801, 1
        %v840 = vrot.slane %v802, 1
        %v841 = vsel %vm368, %v839, %v840
        %v842 = vrot.slane %v803, 1
        %v843 = vrot.slane %v804, 1
        %v844 = vsel %vm368, %v842, %v843
        %v845 = vrot.slane %v805, 1
        %v846 = vrot.slane %v806, 1
        %v847 = vsel %vm368, %v845, %v846
        %v848 = vrot.slane %v807, 1
        %v849 = vrot.slane %v808, 1
        %v850 = vsel %vm368, %v848, %v849
        %v851 = vrot.slane %v809, 1
        %v852 = vrot.slane %v810, 1
        %v853 = vsel %vm368, %v851, %v852
        %v854 = vrot.slane %v811, 1
        %v855 = vrot.slane %v812, 1
        %v856 = vsel %vm368, %v854, %v855
        %vm857 = vcmask 1045504
        %v858 = vrot.slane %v797, 2
        %v859 = vrot.slane %v798, 2
        %v860 = vsel %vm857, %v858, %v859
        %v861 = vrot.slane %v799, 2
        %v862 = vrot.slane %v800, 2
        %v863 = vsel %vm857, %v861, %v862
        %v864 = vrot.slane %v801, 2
        %v865 = vrot.slane %v802, 2
        %v866 = vsel %vm857, %v864, %v865
        %v867 = vrot.slane %v803, 2
        %v868 = vrot.slane %v804, 2
        %v869 = vsel %vm857, %v867, %v868
        %v870 = vrot.slane %v805, 2
        %v871 = vrot.slane %v806, 2
        %v872 = vsel %vm857, %v870, %v871
        %v873 = vrot.slane %v807, 2
        %v874 = vrot.slane %v808, 2
        %v875 = vsel %vm857, %v873, %v874
        %v876 = vrot.slane %v809, 2
        %v877 = vrot.slane %v810, 2
        %v878 = vsel %vm857, %v876, %v877
        %v879 = vrot.slane %v811, 2
        %v880 = vrot.slane %v812, 2
        %v881 = vsel %vm857, %v879, %v880
        %v884 = vrot.slane %v813, 1
        %v885 = vrot.slane %v814, 1
        %v886 = vsel %vm368, %v884, %v885
        %v887 = vrot.slane %v813, 2
        %v888 = vrot.slane %v814, 2
        %v889 = vsel %vm857, %v887, %v888
        %v892 = vrot.slane %v815, 1
        %v893 = vrot.slane %v816, 1
        %v894 = vsel %vm368, %v892, %v893
        %v895 = vrot.slane %v815, 2
        %v896 = vrot.slane %v816, 2
        %v897 = vsel %vm857, %v895, %v896
        %898 = vrot.lane.b32.xlu0 %v835, 8
        %v899 = vpop.permute.xlu0 %898
        %900 = vrot.lane.b32.xlu0 %v838, 8
        %v901 = vpop.permute.xlu0 %900
        %902 = vrot.lane.b32.xlu0 %v841, 8
        %v903 = vpop.permute.xlu0 %902
        %904 = vrot.lane.b32.xlu0 %v844, 8
        %v905 = vpop.permute.xlu0 %904
        %906 = vrot.lane.b32.xlu0 %v847, 8
        %v907 = vpop.permute.xlu0 %906
        %908 = vrot.lane.b32.xlu0 %v850, 8
        %v909 = vpop.permute.xlu0 %908
        %910 = vrot.lane.b32.xlu0 %v853, 8
        %v911 = vpop.permute.xlu0 %910
        %912 = vrot.lane.b32.xlu0 %v856, 8
        %v913 = vpop.permute.xlu0 %912
        %922 = vrot.lane.b32.xlu0 %v860, 16
        %v923 = vpop.permute.xlu0 %922
        %924 = vrot.lane.b32.xlu0 %v863, 16
        %v925 = vpop.permute.xlu0 %924
        %926 = vrot.lane.b32.xlu0 %v866, 16
        %v927 = vpop.permute.xlu0 %926
        %928 = vrot.lane.b32.xlu0 %v869, 16
        %v929 = vpop.permute.xlu0 %928
        %930 = vrot.lane.b32.xlu0 %v872, 16
        %v931 = vpop.permute.xlu0 %930
        %932 = vrot.lane.b32.xlu0 %v875, 16
        %v933 = vpop.permute.xlu0 %932
        %934 = vrot.lane.b32.xlu0 %v878, 16
        %v935 = vpop.permute.xlu0 %934
        %936 = vrot.lane.b32.xlu0 %v881, 16
        %v937 = vpop.permute.xlu0 %936
        %946 = vrot.lane.b32.xlu0 %v799, 24
        %v947 = vpop.permute.xlu0 %946
        %948 = vrot.lane.b32.xlu0 %v801, 24
        %v949 = vpop.permute.xlu0 %948
        %950 = vrot.lane.b32.xlu0 %v803, 24
        %v951 = vpop.permute.xlu0 %950
        %952 = vrot.lane.b32.xlu0 %v805, 24
        %v953 = vpop.permute.xlu0 %952
        %954 = vrot.lane.b32.xlu0 %v807, 24
        %v955 = vpop.permute.xlu0 %954
        %956 = vrot.lane.b32.xlu0 %v809, 24
        %v957 = vpop.permute.xlu0 %956
        %958 = vrot.lane.b32.xlu0 %v811, 24
        %v959 = vpop.permute.xlu0 %958
        %960 = vrot.lane.b32.xlu0 %v813, 24
        %v961 = vpop.permute.xlu0 %960
        %970 = vrot.lane.b32.xlu0 %v838, 32
        %v971 = vpop.permute.xlu0 %970
        %972 = vrot.lane.b32.xlu0 %v841, 32
        %v973 = vpop.permute.xlu0 %972
        %974 = vrot.lane.b32.xlu0 %v844, 32
        %v975 = vpop.permute.xlu0 %974
        %976 = vrot.lane.b32.xlu0 %v847, 32
        %v977 = vpop.permute.xlu0 %976
        %978 = vrot.lane.b32.xlu0 %v850, 32
        %v979 = vpop.permute.xlu0 %978
        %980 = vrot.lane.b32.xlu0 %v853, 32
        %v981 = vpop.permute.xlu0 %980
        %982 = vrot.lane.b32.xlu0 %v856, 32
        %v983 = vpop.permute.xlu0 %982
        %984 = vrot.lane.b32.xlu0 %v886, 32
        %v985 = vpop.permute.xlu0 %984
        %994 = vrot.lane.b32.xlu0 %v863, 40
        %v995 = vpop.permute.xlu0 %994
        %996 = vrot.lane.b32.xlu0 %v866, 40
        %v997 = vpop.permute.xlu0 %996
        %998 = vrot.lane.b32.xlu0 %v869, 40
        %v999 = vpop.permute.xlu0 %998
        %1000 = vrot.lane.b32.xlu0 %v872, 40
        %v1001 = vpop.permute.xlu0 %1000
        %1002 = vrot.lane.b32.xlu0 %v875, 40
        %v1003 = vpop.permute.xlu0 %1002
        %1004 = vrot.lane.b32.xlu0 %v878, 40
        %v1005 = vpop.permute.xlu0 %1004
        %1006 = vrot.lane.b32.xlu0 %v881, 40
        %v1007 = vpop.permute.xlu0 %1006
        %1008 = vrot.lane.b32.xlu0 %v889, 40
        %v1009 = vpop.permute.xlu0 %1008
        %1018 = vrot.lane.b32.xlu0 %v801, 48
        %v1019 = vpop.permute.xlu0 %1018
        %1020 = vrot.lane.b32.xlu0 %v803, 48
        %v1021 = vpop.permute.xlu0 %1020
        %1022 = vrot.lane.b32.xlu0 %v805, 48
        %v1023 = vpop.permute.xlu0 %1022
        %1024 = vrot.lane.b32.xlu0 %v807, 48
        %v1025 = vpop.permute.xlu0 %1024
        %1026 = vrot.lane.b32.xlu0 %v809, 48
        %v1027 = vpop.permute.xlu0 %1026
        %1028 = vrot.lane.b32.xlu0 %v811, 48
        %v1029 = vpop.permute.xlu0 %1028
        %1030 = vrot.lane.b32.xlu0 %v813, 48
        %v1031 = vpop.permute.xlu0 %1030
        %1032 = vrot.lane.b32.xlu0 %v815, 48
        %v1033 = vpop.permute.xlu0 %1032
        %1042 = vrot.lane.b32.xlu0 %v841, 56
        %v1043 = vpop.permute.xlu0 %1042
        %1044 = vrot.lane.b32.xlu0 %v844, 56
        %v1045 = vpop.permute.xlu0 %1044
        %1046 = vrot.lane.b32.xlu0 %v847, 56
        %v1047 = vpop.permute.xlu0 %1046
        %1048 = vrot.lane.b32.xlu0 %v850, 56
        %v1049 = vpop.permute.xlu0 %1048
        %1050 = vrot.lane.b32.xlu0 %v853, 56
        %v1051 = vpop.permute.xlu0 %1050
        %1052 = vrot.lane.b32.xlu0 %v856, 56
        %v1053 = vpop.permute.xlu0 %1052
        %1054 = vrot.lane.b32.xlu0 %v886, 56
        %v1055 = vpop.permute.xlu0 %1054
        %1056 = vrot.lane.b32.xlu0 %v894, 56
        %v1057 = vpop.permute.xlu0 %1056
        %1066 = vrot.lane.b32.xlu0 %v866, 64
        %v1067 = vpop.permute.xlu0 %1066
        %1068 = vrot.lane.b32.xlu0 %v869, 64
        %v1069 = vpop.permute.xlu0 %1068
        %1070 = vrot.lane.b32.xlu0 %v872, 64
        %v1071 = vpop.permute.xlu0 %1070
        %1072 = vrot.lane.b32.xlu0 %v875, 64
        %v1073 = vpop.permute.xlu0 %1072
        %1074 = vrot.lane.b32.xlu0 %v878, 64
        %v1075 = vpop.permute.xlu0 %1074
        %1076 = vrot.lane.b32.xlu0 %v881, 64
        %v1077 = vpop.permute.xlu0 %1076
        %1078 = vrot.lane.b32.xlu0 %v889, 64
        %v1079 = vpop.permute.xlu0 %1078
        %1080 = vrot.lane.b32.xlu0 %v897, 64
        %v1081 = vpop.permute.xlu0 %1080
        %v1090 = vsel %vm551, %v797, %v899
        %v1091 = vsel %vm551, %v799, %v901
        %v1092 = vsel %vm551, %v801, %v903
        %v1093 = vsel %vm551, %v803, %v905
        %v1094 = vsel %vm551, %v805, %v907
        %v1095 = vsel %vm551, %v807, %v909
        %v1096 = vsel %vm551, %v809, %v911
        %v1097 = vsel %vm551, %v811, %v913
        %v1098 = vsel %vm305, %v1090, %v923
        %v1099 = vsel %vm305, %v1091, %v925
        %v1100 = vsel %vm305, %v1092, %v927
        %v1101 = vsel %vm305, %v1093, %v929
        %v1102 = vsel %vm305, %v1094, %v931
        %v1103 = vsel %vm305, %v1095, %v933
        %v1104 = vsel %vm305, %v1096, %v935
        %v1105 = vsel %vm305, %v1097, %v937
        %v1106 = vsel %vm586, %v1098, %v947
        %v1107 = vsel %vm586, %v1099, %v949
        %v1108 = vsel %vm586, %v1100, %v951
        %v1109 = vsel %vm586, %v1101, %v953
        %v1110 = vsel %vm586, %v1102, %v955
        %v1111 = vsel %vm586, %v1103, %v957
        %v1112 = vsel %vm586, %v1104, %v959
        %v1113 = vsel %vm586, %v1105, %v961
        %v1114 = vsel %vm604, %v1106, %v971
        %v1115 = vsel %vm604, %v1107, %v973
        %v1116 = vsel %vm604, %v1108, %v975
        %v1117 = vsel %vm604, %v1109, %v977
        %v1118 = vsel %vm604, %v1110, %v979
        %v1119 = vsel %vm604, %v1111, %v981
        %v1120 = vsel %vm604, %v1112, %v983
        %v1121 = vsel %vm604, %v1113, %v985
        %vm1122 = vcmask 326656
        %v1123 = vsel %vm1122, %v1114, %v995
        %v1124 = vsel %vm1122, %v1115, %v997
        %v1125 = vsel %vm1122, %v1116, %v999
        %v1126 = vsel %vm1122, %v1117, %v1001
        %v1127 = vsel %vm1122, %v1118, %v1003
        %v1128 = vsel %vm1122, %v1119, %v1005
        %v1129 = vsel %vm1122, %v1120, %v1007
        %v1130 = vsel %vm1122, %v1121, %v1009
        %vm1131 = vcmask 392192
        %v1132 = vsel %vm1131, %v1123, %v1019
        %v1133 = vsel %vm1131, %v1124, %v1021
        %v1134 = vsel %vm1131, %v1125, %v1023
        %v1135 = vsel %vm1131, %v1126, %v1025
        %v1136 = vsel %vm1131, %v1127, %v1027
        %v1137 = vsel %vm1131, %v1128, %v1029
        %v1138 = vsel %vm1131, %v1129, %v1031
        %v1139 = vsel %vm1131, %v1130, %v1033
        %vm1140 = vcmask 457728
        %v1141 = vsel %vm1140, %v1132, %v1043
        %v1142 = vsel %vm1140, %v1133, %v1045
        %v1143 = vsel %vm1140, %v1134, %v1047
        %v1144 = vsel %vm1140, %v1135, %v1049
        %v1145 = vsel %vm1140, %v1136, %v1051
        %v1146 = vsel %vm1140, %v1137, %v1053
        %v1147 = vsel %vm1140, %v1138, %v1055
        %v1148 = vsel %vm1140, %v1139, %v1057
        %vm1149 = vcmask 523264
        %v1150 = vsel %vm1149, %v1141, %v1067
        %v1151 = vsel %vm1149, %v1142, %v1069
        %v1152 = vsel %vm1149, %v1143, %v1071
        %v1153 = vsel %vm1149, %v1144, %v1073
        %v1154 = vsel %vm1149, %v1145, %v1075
        %v1155 = vsel %vm1149, %v1146, %v1077
        %v1156 = vsel %vm1149, %v1147, %v1079
        %v1157 = vsel %vm1149, %v1148, %v1081
        %v1158 = vld [vmem:[%s3] sm:$0xff]
        %v1159 = vld [vmem:[%s3 + $0x8] sm:$0xff]
        %v1160 = vld [vmem:[%s3 + $0x10] sm:$0xff]
        %v1161 = vld [vmem:[%s3 + $0x18] sm:$0xff]
        %v1162 = vld [vmem:[%s3 + $0x20] sm:$0xff]
        %v1163 = vld [vmem:[%s3 + $0x28] sm:$0xff]
        %v1164 = vld [vmem:[%s3 + $0x30] sm:$0xff]
        %v1165 = vld [vmem:[%s3 + $0x38] sm:$0xff]
        %v1166 = vld [vmem:[%s3 + $0x40] sm:$0xff]
        %v1167 = vld [vmem:[%s4] sm:$0x1]
        %v1169 = vlaneseq
        %v1170 = vshrl.u32 %v1169, 7
        %v1171 = vsub.s32 0, %v1170
        %v1172 = vrot.slane %v1167, %v1171
        %vm1174 = vcmask 588800
        %v1176 = vsel %vm1174, %v1150, 0
        %v1179 = vsel %vm1174, %v1151, 0
        %v1182 = vsel %vm1174, %v1152, 0
        %v1185 = vsel %vm1174, %v1153, 0
        %v1188 = vsel %vm1174, %v1154, 0
        %v1191 = vsel %vm1174, %v1155, 0
        %v1194 = vsel %vm1174, %v1156, 0
        %v1197 = vsel %vm1174, %v1157, 0
        %1199 = vmatprep.subr.mxu0 0.0
        %1200 = vmatpush1.msra.mxu0 0.0
        %1201 = vmatprep.subr.mxu0 0.0
        %1202 = vmatpush1.msra.mxu0 0.0
        %1203 = vmatprep.subr.mxu0 0.0
        %1204 = vmatpush1.msra.mxu0 0.0
        %1205 = vmatprep.subr.mxu0 0.0
        %1206 = vmatpush1.msra.mxu0 0.0
        %1207 = vmatprep.subr.mxu0 0.0
        %1208 = vmatpush1.msra.mxu0 0.0
        %1209 = vmatprep.subr.mxu0 0.0
        %1210 = vmatpush1.msra.mxu0 0.0
        %1211 = vmatprep.subr.mxu0 0.0
        %1212 = vmatpush1.msra.mxu0 0.0
        %1213 = vmatprep.subr.mxu0 0.0
        %1214 = vmatpush1.msra.mxu0 %v1166
        %1215 = vmatprep.subr.mxu0 0.0
        %1216 = vmatpush1.msra.mxu0 %v1165
        %1217 = vmatprep.subr.mxu0 0.0
        %1218 = vmatpush1.msra.mxu0 %v1164
        %1219 = vmatprep.subr.mxu0 0.0
        %1220 = vmatpush1.msra.mxu0 %v1163
        %1221 = vmatprep.subr.mxu0 0.0
        %1222 = vmatpush1.msra.mxu0 %v1162
        %1223 = vmatprep.subr.mxu0 0.0
        %1224 = vmatpush1.msra.mxu0 %v1161
        %1225 = vmatprep.subr.mxu0 0.0
        %1226 = vmatpush1.msra.mxu0 %v1160
        %1227 = vmatprep.subr.mxu0 0.0
        %1228 = vmatpush1.msra.mxu0 %v1159
        %1229 = vmatprep.subr.mxu0 0.0
        %1230 = vmatpush1.msra.mxu0 %v1158
        %1231 = vmatprep.subr.mxu0 0.0
        %1232 = vmatpush2.msra.mxu0 0.0
        %1233 = vmatprep.subr.mxu0 0.0
        %1234 = vmatpush2.msra.mxu0 0.0
        %1235 = vmatprep.subr.mxu0 0.0
        %1236 = vmatpush2.msra.mxu0 0.0
        %1237 = vmatprep.subr.mxu0 0.0
        %1238 = vmatpush2.msra.mxu0 0.0
        %1239 = vmatprep.subr.mxu0 0.0
        %1240 = vmatpush2.msra.mxu0 0.0
        %1241 = vmatprep.subr.mxu0 0.0
        %1242 = vmatpush2.msra.mxu0 0.0
        %1243 = vmatprep.subr.mxu0 0.0
        %1244 = vmatpush2.msra.mxu0 0.0
        %1245 = vmatprep.subr.mxu0 0.0
        %1246 = vmatpush2.msra.mxu0 0.0
        %1247 = vmatprep.subr.mxu0 0.0
        %1248 = vmatpush2.msra.mxu0 0.0
        %1249 = vmatprep.subr.mxu0 0.0
        %1250 = vmatpush2.msra.mxu0 0.0
        %1251 = vmatprep.subr.mxu0 0.0
        %1252 = vmatpush2.msra.mxu0 0.0
        %1253 = vmatprep.subr.mxu0 0.0
        %1254 = vmatpush2.msra.mxu0 0.0
        %1255 = vmatprep.subr.mxu0 0.0
        %1256 = vmatpush2.msra.mxu0 0.0
        %1257 = vmatprep.subr.mxu0 0.0
        %1258 = vmatpush2.msra.mxu0 0.0
        %1259 = vmatprep.subr.mxu0 0.0
        %1260 = vmatpush2.msra.mxu0 0.0
        %1261 = vmatprep.subr.mxu0 0.0
        %1262 = vmatpush2.msra.mxu0 0.0
        %1263 = vmatprep.mubr.f32.mxu0 0.0
        %1264 = vmatmul.mubr.f32.gmra.mxu0 %v1176
        %v1265 = vpop.f32.mrf.mxu0
        %v1266 = vadd.f32 %v1172, %v1265
        %v1267 = vpop.f32.mrf.mxu0
        %1268 = vmatprep.mubr.f32.mxu0 0.0
        %1269 = vmatmul.mubr.f32.gmra.mxu0 %v1179
        %v1270 = vpop.f32.mrf.mxu0
        %v1271 = vadd.f32 %v1172, %v1270
        %v1272 = vpop.f32.mrf.mxu0
        %1273 = vmatprep.mubr.f32.mxu0 0.0
        %1274 = vmatmul.mubr.f32.gmra.mxu0 %v1182
        %v1275 = vpop.f32.mrf.mxu0
        %v1276 = vadd.f32 %v1172, %v1275
        %v1277 = vpop.f32.mrf.mxu0
        %1278 = vmatprep.mubr.f32.mxu0 0.0
        %1279 = vmatmul.mubr.f32.gmra.mxu0 %v1185
        %v1280 = vpop.f32.mrf.mxu0
        %v1281 = vadd.f32 %v1172, %v1280
        %v1282 = vpop.f32.mrf.mxu0
        %1283 = vmatprep.mubr.f32.mxu0 0.0
        %1284 = vmatmul.mubr.f32.gmra.mxu0 %v1188
        %v1285 = vpop.f32.mrf.mxu0
        %v1286 = vadd.f32 %v1172, %v1285
        %v1287 = vpop.f32.mrf.mxu0
        %1288 = vmatprep.mubr.f32.mxu0 0.0
        %1289 = vmatmul.mubr.f32.gmra.mxu0 %v1191
        %v1290 = vpop.f32.mrf.mxu0
        %v1291 = vadd.f32 %v1172, %v1290
        %v1292 = vpop.f32.mrf.mxu0
        %1293 = vmatprep.mubr.f32.mxu0 0.0
        %1294 = vmatmul.mubr.f32.gmra.mxu0 %v1194
        %v1295 = vpop.f32.mrf.mxu0
        %v1296 = vadd.f32 %v1172, %v1295
        %v1297 = vpop.f32.mrf.mxu0
        %1298 = vmatprep.mubr.f32.mxu0 0.0
        %1299 = vmatmul.mubr.f32.gmra.mxu0 %v1197
        %v1300 = vpop.f32.mrf.mxu0
        %v1301 = vadd.f32 %v1172, %v1300
        %v1302 = vpop.f32.mrf.mxu0
        %1303 = vdwg.mxu0
        %v1304 = vld [vmem:[%s5] sm:$0xf]
        %v1305 = vld [vmem:[%s6] sm:$0x1]
        %v1307 = vlaneseq
        %v1308 = vshrl.u32 %v1307, 7
        %v1309 = vsub.s32 0, %v1308
        %v1310 = vrot.slane %v1305, %v1309
        %v1313 = vsel %vm542, %v297, 0
        %v1316 = vsel %vm542, %v298, 0
        %v1319 = vsel %vm542, %v299, 0
        %v1322 = vsel %vm542, %v300, 0
        %v1325 = vsel %vm542, %v301, 0
        %v1328 = vsel %vm542, %v302, 0
        %v1331 = vsel %vm542, %v303, 0
        %v1334 = vsel %vm542, %v304, 0
        %v1337 = vsel %vm650, %v1304, 0
        %1339 = vmatprep.subr.mxu0 0.0
        %1340 = vmatpush1.msra.mxu0 0.0
        %1341 = vmatprep.subr.mxu0 0.0
        %1342 = vmatpush1.msra.mxu0 0.0
        %1343 = vmatprep.subr.mxu0 0.0
        %1344 = vmatpush1.msra.mxu0 0.0
        %1345 = vmatprep.subr.mxu0 0.0
        %1346 = vmatpush1.msra.mxu0 0.0
        %1347 = vmatprep.subr.mxu0 0.0
        %1348 = vmatpush1.msra.mxu0 0.0
        %1349 = vmatprep.subr.mxu0 0.0
        %1350 = vmatpush1.msra.mxu0 0.0
        %1351 = vmatprep.subr.mxu0 0.0
        %1352 = vmatpush1.msra.mxu0 0.0
        %1353 = vmatprep.subr.mxu0 0.0
        %1354 = vmatpush1.msra.mxu0 0.0
        %1355 = vmatprep.subr.mxu0 0.0
        %1356 = vmatpush1.msra.mxu0 0.0
        %1357 = vmatprep.subr.mxu0 0.0
        %1358 = vmatpush1.msra.mxu0 0.0
        %1359 = vmatprep.subr.mxu0 0.0
        %1360 = vmatpush1.msra.mxu0 0.0
        %1361 = vmatprep.subr.mxu0 0.0
        %1362 = vmatpush1.msra.mxu0 0.0
        %1363 = vmatprep.subr.mxu0 0.0
        %1364 = vmatpush1.msra.mxu0 0.0
        %1365 = vmatprep.subr.mxu0 0.0
        %1366 = vmatpush1.msra.mxu0 0.0
        %1367 = vmatprep.subr.mxu0 0.0
        %1368 = vmatpush1.msra.mxu0 0.0
        %1369 = vmatprep.subr.mxu0 0.0
        %1370 = vmatpush1.msra.mxu0 %v1337
        %1371 = vmatprep.subr.mxu0 0.0
        %1372 = vmatpush2.msra.mxu0 0.0
        %1373 = vmatprep.subr.mxu0 0.0
        %1374 = vmatpush2.msra.mxu0 0.0
        %1375 = vmatprep.subr.mxu0 0.0
        %1376 = vmatpush2.msra.mxu0 0.0
        %1377 = vmatprep.subr.mxu0 0.0
        %1378 = vmatpush2.msra.mxu0 0.0
        %1379 = vmatprep.subr.mxu0 0.0
        %1380 = vmatpush2.msra.mxu0 0.0
        %1381 = vmatprep.subr.mxu0 0.0
        %1382 = vmatpush2.msra.mxu0 0.0
        %1383 = vmatprep.subr.mxu0 0.0
        %1384 = vmatpush2.msra.mxu0 0.0
        %1385 = vmatprep.subr.mxu0 0.0
        %1386 = vmatpush2.msra.mxu0 0.0
        %1387 = vmatprep.subr.mxu0 0.0
        %1388 = vmatpush2.msra.mxu0 0.0
        %1389 = vmatprep.subr.mxu0 0.0
        %1390 = vmatpush2.msra.mxu0 0.0
        %1391 = vmatprep.subr.mxu0 0.0
        %1392 = vmatpush2.msra.mxu0 0.0
        %1393 = vmatprep.subr.mxu0 0.0
        %1394 = vmatpush2.msra.mxu0 0.0
        %1395 = vmatprep.subr.mxu0 0.0
        %1396 = vmatpush2.msra.mxu0 0.0
        %1397 = vmatprep.subr.mxu0 0.0
        %1398 = vmatpush2.msra.mxu0 0.0
        %1399 = vmatprep.subr.mxu0 0.0
        %1400 = vmatpush2.msra.mxu0 0.0
        %1401 = vmatprep.subr.mxu0 0.0
        %1402 = vmatpush2.msra.mxu0 0.0
        %1403 = vmatprep.mubr.f32.mxu0 0.0
        %1404 = vmatmul.mubr.f32.gmra.mxu0 %v1313
        %v1405 = vpop.f32.mrf.mxu0
        %v1406 = vadd.f32 %v1310, %v1405
        %v1407 = vpop.f32.mrf.mxu0
        %1408 = vmatprep.mubr.f32.mxu0 0.0
        %1409 = vmatmul.mubr.f32.gmra.mxu0 %v1316
        %v1410 = vpop.f32.mrf.mxu0
        %v1411 = vadd.f32 %v1310, %v1410
        %v1412 = vpop.f32.mrf.mxu0
        %1413 = vmatprep.mubr.f32.mxu0 0.0
        %1414 = vmatmul.mubr.f32.gmra.mxu0 %v1319
        %v1415 = vpop.f32.mrf.mxu0
        %v1416 = vadd.f32 %v1310, %v1415
        %v1417 = vpop.f32.mrf.mxu0
        %1418 = vmatprep.mubr.f32.mxu0 0.0
        %1419 = vmatmul.mubr.f32.gmra.mxu0 %v1322
        %v1420 = vpop.f32.mrf.mxu0
        %v1421 = vadd.f32 %v1310, %v1420
        %v1422 = vpop.f32.mrf.mxu0
        %1423 = vmatprep.mubr.f32.mxu0 0.0
        %1424 = vmatmul.mubr.f32.gmra.mxu0 %v1325
        %v1425 = vpop.f32.mrf.mxu0
        %v1426 = vadd.f32 %v1310, %v1425
        %v1427 = vpop.f32.mrf.mxu0
        %1428 = vmatprep.mubr.f32.mxu0 0.0
        %1429 = vmatmul.mubr.f32.gmra.mxu0 %v1328
        %v1430 = vpop.f32.mrf.mxu0
        %v1431 = vadd.f32 %v1310, %v1430
        %v1432 = vpop.f32.mrf.mxu0
        %1433 = vmatprep.mubr.f32.mxu0 0.0
        %1434 = vmatmul.mubr.f32.gmra.mxu0 %v1331
        %v1435 = vpop.f32.mrf.mxu0
        %v1436 = vadd.f32 %v1310, %v1435
        %v1437 = vpop.f32.mrf.mxu0
        %1438 = vmatprep.mubr.f32.mxu0 0.0
        %1439 = vmatmul.mubr.f32.gmra.mxu0 %v1334
        %v1440 = vpop.f32.mrf.mxu0
        %v1441 = vadd.f32 %v1310, %v1440
        %v1442 = vpop.f32.mrf.mxu0
        %1443 = vdwg.mxu0
        %v1444 = vadd.f32 %v1266, %v1406
        %v1445 = vadd.f32 %v1271, %v1411
        %v1446 = vadd.f32 %v1276, %v1416
        %v1447 = vadd.f32 %v1281, %v1421
        %v1448 = vadd.f32 %v1286, %v1426
        %v1449 = vadd.f32 %v1291, %v1431
        %v1450 = vadd.f32 %v1296, %v1436
        %v1451 = vadd.f32 %v1301, %v1441
        %v1452 = vmax.f32 %v1444, 0.0
        %v1453 = vmax.f32 %v1445, 0.0
        %v1454 = vmax.f32 %v1446, 0.0
        %v1455 = vmax.f32 %v1447, 0.0
        %v1456 = vmax.f32 %v1448, 0.0
        %v1457 = vmax.f32 %v1449, 0.0
        %v1458 = vmax.f32 %v1450, 0.0
        %v1459 = vmax.f32 %v1451, 0.0
        %1460 = vxpose.xlu0.b32.start [1/16] %v1452, 128
        %1461 = vxpose.xlu0.b32.cont [2/16] %v1453, 128
        %1462 = vxpose.xlu0.b32.cont [3/16] %v1454, 128
        %1463 = vxpose.xlu0.b32.cont [4/16] %v1455, 128
        %1464 = vxpose.xlu0.b32.cont [5/16] %v1456, 128
        %1465 = vxpose.xlu0.b32.cont [6/16] %v1457, 128
        %1466 = vxpose.xlu0.b32.cont [7/16] %v1458, 128
        %1467 = vxpose.xlu0.b32.cont [8/16] %v1459, 128
        %1468 = vxpose.xlu0.b32.cont [9/16] 0.0, 128
        %1469 = vxpose.xlu0.b32.cont [10/16] 0.0, 128
        %1470 = vxpose.xlu0.b32.cont [11/16] 0.0, 128
        %1471 = vxpose.xlu0.b32.cont [12/16] 0.0, 128
        %1472 = vxpose.xlu0.b32.cont [13/16] 0.0, 128
        %1473 = vxpose.xlu0.b32.cont [14/16] 0.0, 128
        %1474 = vxpose.xlu0.b32.cont [15/16] 0.0, 128
        %1475 = vxpose.xlu0.b32.end [16/16] 0.0, 128
        %v1476 = vpop.trf.xlu0
        %v1477 = vpop.trf.xlu0
        %v1478 = vpop.trf.xlu0
        %v1479 = vpop.trf.xlu0
        %v1480 = vpop.trf.xlu0
        %v1481 = vpop.trf.xlu0
        %v1482 = vpop.trf.xlu0
        %v1483 = vpop.trf.xlu0
        %v1484 = vpop.trf.xlu0
        %v1485 = vpop.trf.xlu0
        %v1486 = vpop.trf.xlu0
        %v1487 = vpop.trf.xlu0
        %v1488 = vpop.trf.xlu0
        %v1489 = vpop.trf.xlu0
        %v1490 = vpop.trf.xlu0
        %v1491 = vpop.trf.xlu0
        %1492 = vst.msk [vmem:[%s296] sm:$0xff] %vm1149, %v1476
        %s1493 = sand.u32 %s184, 1
        %s1494 = scalar_lea.sflag [#allocation6], %s1493
        %s1495 = sand.u32 %s184, 1
        %s1496 = smul.addr %s1495, 8
        %s1497 = scalar_lea.vmem [#allocation7], %s1496
        // Predicated region
        $region53: #{tpu_custom_call.1} parent=47 // pred_check
          %p1498 = pneg %p194
        $region54: #{tpu_custom_call.1} parent=47 // pred_check_branch
          %1500 = sbr.rel (%p1498) target = $region56
        $region55: #{tpu_custom_call.1} parent=47 // pred_region
          %s1502 = ssub.s32 128, 128
          %1503 = vsyncadd %s1494, %s1502
          %s1504 = smul.addr %s24, 128
          %s1505 = scalar_lea.hbm %s7, %s1504
          %s1507 = sshll.u32 %s1497, 4
          %s1508 = int_to_ptr.vmem [resolvable:$true] %s1507
          %1510 = dma.vmem_to_hbm [thread:$0]  %s1508, 128, %s1505, %s1494
        $region56: #{tpu_custom_call.1} parent=47 // pred_fallthru
          _
      $region48: #{tpu_custom_call.1} parent=5 // pred_fallthru
        _
      %p1511 = scmp.le.s32.totalorder 2, %s19
      // Predicated region
      $region57: #{tpu_custom_call.1} parent=5 // pred_check
        %p1512 = pneg %p1511
      $region58: #{tpu_custom_call.1} parent=5 // pred_check_branch
        %1514 = sbr.rel (%p1512) target = $region60
      $region59: #{tpu_custom_call.1} parent=5 // pred_region
        %s1515 = ssub.s32 %s19, 2
        // Predicated region
        $region61: #{tpu_custom_call.1} parent=59 // pred_check
          %p1516 = pneg %p200
        $region62: #{tpu_custom_call.1} parent=59 // pred_check_branch
          %1518 = sbr.rel (%p1516) target = $region64
        $region63: #{tpu_custom_call.1} parent=59 // pred_region
          %s1519 = sand.u32 %s185, 1
          %s1520 = scalar_lea.sflag [#allocation6], %s1519
          %s1521 = sand.u32 %s185, 1
          %s1522 = smul.addr %s1521, 8
          %s1523 = scalar_lea.vmem [#allocation7], %s1522
          %1524 = dma.done %s1520, 128
        $region64: #{tpu_custom_call.1} parent=59 // pred_fallthru
          _
      $region60: #{tpu_custom_call.1} parent=5 // pred_fallthru
        _
    $region6: #{tpu_custom_call.1} parent=1 // loop_footer
      %s23 = sadd.s32 1, %s19
    $region7: #{tpu_custom_call.1} parent=1 // loop_footer_branch
      %18 = sbr.rel target = $region3
    $region8: #{tpu_custom_call.1} parent=1 // loop_exit
      _
    %1525 = vsyncpa [#allocation5], 1
    %s1526 = scalar_lea.sflag [#allocation5], 1
    %1527 = vsyncpa %s1526, 1
    %1528 = vsyncpa [#allocation6], 1
    %s1529 = scalar_lea.sflag [#allocation6], 1
    %1530 = vsyncpa %s1529, 1

</llo_original>
